<compile_context>
chip_gen: v5e
topology: v5e:2x2
jax: 0.10.0
libtpu: 0.0.40
codegen_flags: <defaults>
</compile_context>

<pallas_src>
import jax
import jax.numpy as jnp
import numpy as np
from jax.experimental import pallas as pl
from jax.experimental.pallas import tpu as pltpu

# Model hyper-parameters (small, consistent with the module's forward).
N_LAYER = 2
D_MODEL = 32
N_HEAD = 4
D_FF = 64
EPS = 1e-5  # nn.LayerNorm default


def _layernorm(x, gamma, beta):
    mu = jnp.mean(x, axis=-1, keepdims=True)
    var = jnp.mean((x - mu) ** 2, axis=-1, keepdims=True)
    return (x - mu) * jax.lax.rsqrt(var + EPS) * gamma + beta


# ----------------------------------------------------------------------------
# Fused kernel: all encoder layers + final LayerNorm for one batch element.
# ----------------------------------------------------------------------------
def encoder_kernel(x_ref, mask_ref,
                   wqkv_ref, bqkv_ref, wo_ref, bo_ref,
                   w1_ref, b1_ref, w2_ref, b2_ref,
                   g1_ref, be1_ref, g2_ref, be2_ref,
                   ng_ref, nb_ref, out_ref):
    S, D = x_ref.shape
    L = wqkv_ref.shape[0]
    H = N_HEAD
    dh = D // H

    # Additive mask bias, computed ONCE (hoisted out of the layer/head loops).
    # mask block is (1, 1, S) and broadcasts over (H, S_q, S_k) scores.
    bias = jnp.where(mask_ref[...] > 0, jnp.float32(0.0), jnp.float32(-1e9))

    xf = x_ref[...]                              # (S, D) flat, lane/sublane dense

    # N_LAYER is tiny (2): static unroll is fine.
    # TODO(synk): move layers onto a grid axis / fori_loop if L grows
    # (static unrolling does not bound vreg live ranges).
    for l in range(L):
        # --- fused QKV projection: ONE (S, D) x (D, 3D) MXU push per layer ---
        qkv = jnp.dot(xf, wqkv_ref[l],
                      preferred_element_type=jnp.float32) + bqkv_ref[l]

        # Fold heads into a leading batch axis -> (H, S, dh).
        qh = jnp.stack([qkv[:, h * dh:(h + 1) * dh] for h in range(H)], axis=0)
        kh = jnp.stack([qkv[:, D + h * dh:D + (h + 1) * dh] for h in range(H)], axis=0)
        vh = jnp.stack([qkv[:, 2 * D + h * dh:2 * D + (h + 1) * dh] for h in range(H)], axis=0)

        # --- one batched attention per layer (scores, softmax, context) ---
        s = jnp.einsum('hqd,hkd->hqk', qh, kh,
                       preferred_element_type=jnp.float32)        # (H, S, S)
        s = s + bias
        s = s - jnp.max(s, axis=-1, keepdims=True)
        p = jnp.exp(s)
        # softmax divide on the EUP (one reciprocal per layer, not 4 divides)
        p = p * pl.reciprocal(jnp.sum(p, axis=-1, keepdims=True), approx=True)
        ctx = jnp.einsum('hqk,hkd->hqd', p, vh,
                         preferred_element_type=jnp.float32)      # (H, S, dh)
        ctx = jnp.concatenate([ctx[h] for h in range(H)], axis=-1)  # (S, D)

        attn = jnp.dot(ctx, wo_ref[l],
                       preferred_element_type=jnp.float32) + bo_ref[l]

        # --- residual + LayerNorm 1 ---
        x1 = _layernorm(xf + attn, g1_ref[l], be1_ref[l])

        # --- position-wise FFN ---
        h1 = jnp.maximum(
            jnp.dot(x1, w1_ref[l], preferred_element_type=jnp.float32) + b1_ref[l],
            0.0)
        h2 = jnp.dot(h1, w2_ref[l],
                     preferred_element_type=jnp.float32) + b2_ref[l]

        # --- residual + LayerNorm 2 ---
        xf = _layernorm(x1 + h2, g2_ref[l], be2_ref[l])

    # --- final LayerNorm, stored to the flat (S, D) output block ---
    out_ref[...] = _layernorm(xf, ng_ref[...], nb_ref[...])


def encoder_forward(src, src_mask, packed):
    """One fused pallas_call for the whole Encoder.forward.

    src: (B, S, D) float32, src_mask: (B, 1, S) float32 (padding mask).
    """
    B, S, D = src.shape
    x2d = src.reshape(B * S, D)          # host-side reshape: free XLA metadata

    weights = (packed["wqkv"], packed["bqkv"], packed["wo"], packed["bo"],
               packed["w1"], packed["b1"], packed["w2"], packed["b2"],
               packed["g1"], packed["be1"], packed["g2"], packed["be2"],
               packed["norm_g"], packed["norm_b"])

    def resident(arr):
        # full-array block, constant index_map -> stays VMEM-resident.
        nd = arr.ndim
        return pl.BlockSpec(arr.shape, lambda b, _nd=nd: (0,) * _nd)

    in_specs = ([pl.BlockSpec((S, D), lambda b: (b, 0)),       # activations
                 pl.BlockSpec((1, 1, S), lambda b: (b, 0, 0))]  # padding mask
                + [resident(w) for w in weights])

    out2d = pl.pallas_call(
        encoder_kernel,
        out_shape=jax.ShapeDtypeStruct((B * S, D), jnp.float32),
        grid=(B,),
        in_specs=in_specs,
        out_specs=pl.BlockSpec((S, D), lambda b: (b, 0)),
        compiler_params=pltpu.CompilerParams(
            dimension_semantics=("parallel",),       # split batches across TCs (v7x)
            vmem_limit_bytes=32 * 1024 * 1024),      # safe scoped limit on all gens
    )(x2d, src_mask, *weights)

    return out2d.reshape(B, S, D)


# ----------------------------------------------------------------------------
# Parameter init (distinct weights per layer), host-side packing, reference.
# ----------------------------------------------------------------------------
def init_params(key):
    def dense(k, shape, scale=0.05):
        return (scale * jax.random.normal(k, shape)).astype(jnp.float32)

    layers = []
    for l in range(N_LAYER):
        lk = jax.random.fold_in(key, l)
        ks = jax.random.split(lk, 12)
        layers.append(dict(
            wq=dense(ks[0], (D_MODEL, D_MODEL)), bq=dense(ks[1], (1, D_MODEL)),
            wk=dense(ks[2], (D_MODEL, D_MODEL)), bk=dense(ks[3], (1, D_MODEL)),
            wv=dense(ks[4], (D_MODEL, D_MODEL)), bv=dense(ks[5], (1, D_MODEL)),
            wo=dense(ks[6], (D_MODEL, D_MODEL)), bo=dense(ks[7], (1, D_MODEL)),
            w1=dense(ks[8], (D_MODEL, D_FF)),    b1=dense(ks[9], (1, D_FF)),
            w2=dense(ks[10], (D_FF, D_MODEL)),   b2=dense(ks[11], (1, D_MODEL)),
            g1=jnp.ones((1, D_MODEL), jnp.float32),
            be1=jnp.zeros((1, D_MODEL), jnp.float32),
            g2=jnp.ones((1, D_MODEL), jnp.float32),
            be2=jnp.zeros((1, D_MODEL), jnp.float32),
        ))
    return dict(layers=layers,
                norm_g=jnp.ones((1, D_MODEL), jnp.float32),
                norm_b=jnp.zeros((1, D_MODEL), jnp.float32))


def pack_params(params):
    """Stack per-layer weights along a leading layer axis, fuse Q|K|V, and
    fold the 1/sqrt(dh) attention scale into Wq/bq (kernel-side format)."""
    scale = jnp.float32(1.0 / np.sqrt(D_MODEL // N_HEAD))

    def stack(fn):
        return jnp.stack([fn(lp) for lp in params["layers"]], axis=0)

    return dict(
        wqkv=stack(lambda lp: jnp.concatenate(
            [lp["wq"] * scale, lp["wk"], lp["wv"]], axis=1)),   # (L, D, 3D)
        bqkv=stack(lambda lp: jnp.concatenate(
            [lp["bq"] * scale, lp["bk"], lp["bv"]], axis=1)),   # (L, 1, 3D)
        wo=stack(lambda lp: lp["wo"]), bo=stack(lambda lp: lp["bo"]),
        w1=stack(lambda lp: lp["w1"]), b1=stack(lambda lp: lp["b1"]),
        w2=stack(lambda lp: lp["w2"]), b2=stack(lambda lp: lp["b2"]),
        g1=stack(lambda lp: lp["g1"]), be1=stack(lambda lp: lp["be1"]),
        g2=stack(lambda lp: lp["g2"]), be2=stack(lambda lp: lp["be2"]),
        norm_g=params["norm_g"], norm_b=params["norm_b"])


def reference_forward(src, src_mask, params):
    def ln(x, g, b):
        mu = jnp.mean(x, axis=-1, keepdims=True)
        var = jnp.mean((x - mu) ** 2, axis=-1, keepdims=True)
        return (x - mu) / jnp.sqrt(var + EPS) * g + b

    dh = D_MODEL // N_HEAD
    out = src
    for lp in params["layers"]:
        B, S, _ = out.shape
        q = out @ lp["wq"] + lp["bq"]
        k = out @ lp["wk"] + lp["bk"]
        v = out @ lp["wv"] + lp["bv"]
        q = q.reshape(B, S, N_HEAD, dh).transpose(0, 2, 1, 3)
        k = k.reshape(B, S, N_HEAD, dh).transpose(0, 2, 1, 3)
        v = v.reshape(B, S, N_HEAD, dh).transpose(0, 2, 1, 3)
        s = jnp.einsum("bhqd,bhkd->bhqk", q, k) / jnp.sqrt(jnp.float32(dh))
        s = jnp.where(src_mask[:, None, :, :] > 0, s, -1e9)   # (B,1,1,S) bcast
        p = jax.nn.softmax(s, axis=-1)
        ctx = jnp.einsum("bhqk,bhkd->bhqd", p, v).transpose(0, 2, 1, 3)
        ctx = ctx.reshape(B, S, D_MODEL)
        attn = ctx @ lp["wo"] + lp["bo"]
        x1 = ln(out + attn, lp["g1"], lp["be1"])
        h = jnp.maximum(x1 @ lp["w1"] + lp["b1"], 0.0)
        out = ln(x1 + (h @ lp["w2"] + lp["b2"]), lp["g2"], lp["be2"])
    return ln(out, params["norm_g"], params["norm_b"])


if __name__ == "__main__":
    B, S = 2, 8
    key = jax.random.PRNGKey(0)
    k_src, k_par = jax.random.split(key)

    src = jax.random.normal(k_src, (B, S, D_MODEL), dtype=jnp.float32)
    # padding mask as (B, 1, S): batch 0 attends to all 8 positions, batch 1 to 5
    lengths = jnp.array([8, 5], dtype=jnp.int32)
    col = jnp.arange(S)[None, None, :]                              # (1, 1, S)
    src_mask = (col < lengths[:, None, None]).astype(jnp.float32)   # (B, 1, S)

    params = init_params(k_par)
    packed = pack_params(params)

    out = encoder_forward(src, src_mask, packed)
    out = jax.block_until_ready(out)

    ref = reference_forward(src, src_mask, params)
    # Tolerance is slightly looser than pure-f32 because the kernel uses the
    # EUP approximate reciprocal for the softmax denominator.
    np.testing.assert_allclose(np.asarray(out), np.asarray(ref),
                               rtol=5e-3, atol=5e-3)

    print("KERNEL_OK")
</pallas_src>

<mosaic_0001>
module attributes {stable_mosaic.version = 11 : i64} {
  func.func @encoder_kernel(%arg0: i32, %arg1: memref<8x32xf32, #tpu.memory_space<vmem>>, %arg2: memref<1x1x8xf32, #tpu.memory_space<vmem>>, %arg3: memref<2x32x96xf32, #tpu.memory_space<vmem>>, %arg4: memref<2x1x96xf32, #tpu.memory_space<vmem>>, %arg5: memref<2x32x32xf32, #tpu.memory_space<vmem>>, %arg6: memref<2x1x32xf32, #tpu.memory_space<vmem>>, %arg7: memref<2x32x64xf32, #tpu.memory_space<vmem>>, %arg8: memref<2x1x64xf32, #tpu.memory_space<vmem>>, %arg9: memref<2x64x32xf32, #tpu.memory_space<vmem>>, %arg10: memref<2x1x32xf32, #tpu.memory_space<vmem>>, %arg11: memref<2x1x32xf32, #tpu.memory_space<vmem>>, %arg12: memref<2x1x32xf32, #tpu.memory_space<vmem>>, %arg13: memref<2x1x32xf32, #tpu.memory_space<vmem>>, %arg14: memref<2x1x32xf32, #tpu.memory_space<vmem>>, %arg15: memref<1x32xf32, #tpu.memory_space<vmem>>, %arg16: memref<1x32xf32, #tpu.memory_space<vmem>>, %arg17: memref<8x32xf32, #tpu.memory_space<vmem>>) attributes {dimension_semantics = [#tpu.dimension_semantics<parallel>], iteration_bounds = array<i64: 2>, scalar_prefetch = 0 : i64, scratch_operands = 0 : i64, tpu.core_type = #tpu.core_type<tc>, window_params = [{transform_indices = @transform_0, window_bounds = array<i64: 8, 32>}, {transform_indices = @transform_1, window_bounds = array<i64: 1, 1, 8>}, {pipeline_mode = #tpu.pipeline_mode<synchronous>, transform_indices = @transform_2, window_bounds = array<i64: 2, 32, 96>}, {pipeline_mode = #tpu.pipeline_mode<synchronous>, transform_indices = @transform_3, window_bounds = array<i64: 2, 1, 96>}, {pipeline_mode = #tpu.pipeline_mode<synchronous>, transform_indices = @transform_4, window_bounds = array<i64: 2, 32, 32>}, {pipeline_mode = #tpu.pipeline_mode<synchronous>, transform_indices = @transform_5, window_bounds = array<i64: 2, 1, 32>}, {pipeline_mode = #tpu.pipeline_mode<synchronous>, transform_indices = @transform_6, window_bounds = array<i64: 2, 32, 64>}, {pipeline_mode = #tpu.pipeline_mode<synchronous>, transform_indices = @transform_7, window_bounds = array<i64: 2, 1, 64>}, {pipeline_mode = #tpu.pipeline_mode<synchronous>, transform_indices = @transform_8, window_bounds = array<i64: 2, 64, 32>}, {pipeline_mode = #tpu.pipeline_mode<synchronous>, transform_indices = @transform_9, window_bounds = array<i64: 2, 1, 32>}, {pipeline_mode = #tpu.pipeline_mode<synchronous>, transform_indices = @transform_10, window_bounds = array<i64: 2, 1, 32>}, {pipeline_mode = #tpu.pipeline_mode<synchronous>, transform_indices = @transform_11, window_bounds = array<i64: 2, 1, 32>}, {pipeline_mode = #tpu.pipeline_mode<synchronous>, transform_indices = @transform_12, window_bounds = array<i64: 2, 1, 32>}, {pipeline_mode = #tpu.pipeline_mode<synchronous>, transform_indices = @transform_13, window_bounds = array<i64: 2, 1, 32>}, {pipeline_mode = #tpu.pipeline_mode<synchronous>, transform_indices = @transform_14, window_bounds = array<i64: 1, 32>}, {pipeline_mode = #tpu.pipeline_mode<synchronous>, transform_indices = @transform_15, window_bounds = array<i64: 1, 32>}, {transform_indices = @transform_16, window_bounds = array<i64: 8, 32>}]} {
    %c0 = arith.constant 0 : index
    %c0_0 = arith.constant 0 : index
    %c0_1 = arith.constant 0 : index
    %0 = vector.load %arg2[%c0, %c0_0, %c0_1] : memref<1x1x8xf32, #tpu.memory_space<vmem>>, vector<1x1x8xf32>
    %cst = arith.constant 0.000000e+00 : f32
    %1 = vector.broadcast %cst : f32 to vector<1x1x8xf32>
    %2 = arith.cmpf ogt, %0, %1 : vector<1x1x8xf32>
    %cst_2 = arith.constant 0.000000e+00 : f32
    %cst_3 = arith.constant -1.000000e+09 : f32
    %3 = vector.broadcast %cst_2 : f32 to vector<1x1x8xf32>
    %4 = vector.broadcast %cst_3 : f32 to vector<1x1x8xf32>
    %5 = arith.select %2, %3, %4 : vector<1x1x8xi1>, vector<1x1x8xf32>
    %c0_4 = arith.constant 0 : index
    %c0_5 = arith.constant 0 : index
    %6 = vector.load %arg1[%c0_4, %c0_5] : memref<8x32xf32, #tpu.memory_space<vmem>>, vector<8x32xf32>
    %c0_6 = arith.constant 0 : index
    %c0_7 = arith.constant 0 : index
    %c0_8 = arith.constant 0 : index
    %7 = vector.load %arg3[%c0_6, %c0_7, %c0_8] : memref<2x32x96xf32, #tpu.memory_space<vmem>>, vector<1x32x96xf32>
    %8 = vector.shape_cast %7 : vector<1x32x96xf32> to vector<32x96xf32>
    %cst_9 = arith.constant dense<0.000000e+00> : vector<8x96xf32>
    %9 = tpu.matmul %6, %8, %cst_9 {dimension_numbers = #tpu.dot_dimension_numbers<[1], [0], [0], [1], [0, 0, 1, 1], [], []>} : vector<8x32xf32>, vector<32x96xf32>, vector<8x96xf32> -> vector<8x96xf32>
    %c0_10 = arith.constant 0 : index
    %c0_11 = arith.constant 0 : index
    %c0_12 = arith.constant 0 : index
    %10 = vector.load %arg4[%c0_10, %c0_11, %c0_12] : memref<2x1x96xf32, #tpu.memory_space<vmem>>, vector<1x1x96xf32>
    %11 = vector.shape_cast %10 : vector<1x1x96xf32> to vector<1x96xf32>
    %12 = vector.broadcast %11 : vector<1x96xf32> to vector<8x96xf32>
    %13 = arith.addf %9, %12 : vector<8x96xf32>
    %14 = vector.extract_strided_slice %13 {offsets = [0, 0], sizes = [8, 8], strides = [1, 1]} : vector<8x96xf32> to vector<8x8xf32>
    %15 = vector.extract_strided_slice %13 {offsets = [0, 8], sizes = [8, 8], strides = [1, 1]} : vector<8x96xf32> to vector<8x8xf32>
    %16 = vector.extract_strided_slice %13 {offsets = [0, 16], sizes = [8, 8], strides = [1, 1]} : vector<8x96xf32> to vector<8x8xf32>
    %17 = vector.extract_strided_slice %13 {offsets = [0, 24], sizes = [8, 8], strides = [1, 1]} : vector<8x96xf32> to vector<8x8xf32>
    %18 = vector.shape_cast %14 : vector<8x8xf32> to vector<1x8x8xf32>
    %19 = vector.shape_cast %15 : vector<8x8xf32> to vector<1x8x8xf32>
    %20 = vector.shape_cast %16 : vector<8x8xf32> to vector<1x8x8xf32>
    %21 = vector.shape_cast %17 : vector<8x8xf32> to vector<1x8x8xf32>
    %22 = tpu.concatenate %18, %19, %20, %21 in 0 : vector<1x8x8xf32>, vector<1x8x8xf32>, vector<1x8x8xf32>, vector<1x8x8xf32> -> vector<4x8x8xf32>
    %23 = vector.extract_strided_slice %13 {offsets = [0, 32], sizes = [8, 8], strides = [1, 1]} : vector<8x96xf32> to vector<8x8xf32>
    %24 = vector.extract_strided_slice %13 {offsets = [0, 40], sizes = [8, 8], strides = [1, 1]} : vector<8x96xf32> to vector<8x8xf32>
    %25 = vector.extract_strided_slice %13 {offsets = [0, 48], sizes = [8, 8], strides = [1, 1]} : vector<8x96xf32> to vector<8x8xf32>
    %26 = vector.extract_strided_slice %13 {offsets = [0, 56], sizes = [8, 8], strides = [1, 1]} : vector<8x96xf32> to vector<8x8xf32>
    %27 = vector.shape_cast %23 : vector<8x8xf32> to vector<1x8x8xf32>
    %28 = vector.shape_cast %24 : vector<8x8xf32> to vector<1x8x8xf32>
    %29 = vector.shape_cast %25 : vector<8x8xf32> to vector<1x8x8xf32>
    %30 = vector.shape_cast %26 : vector<8x8xf32> to vector<1x8x8xf32>
    %31 = tpu.concatenate %27, %28, %29, %30 in 0 : vector<1x8x8xf32>, vector<1x8x8xf32>, vector<1x8x8xf32>, vector<1x8x8xf32> -> vector<4x8x8xf32>
    %32 = vector.extract_strided_slice %13 {offsets = [0, 64], sizes = [8, 8], strides = [1, 1]} : vector<8x96xf32> to vector<8x8xf32>
    %33 = vector.extract_strided_slice %13 {offsets = [0, 72], sizes = [8, 8], strides = [1, 1]} : vector<8x96xf32> to vector<8x8xf32>
    %34 = vector.extract_strided_slice %13 {offsets = [0, 80], sizes = [8, 8], strides = [1, 1]} : vector<8x96xf32> to vector<8x8xf32>
    %35 = vector.extract_strided_slice %13 {offsets = [0, 88], sizes = [8, 8], strides = [1, 1]} : vector<8x96xf32> to vector<8x8xf32>
    %36 = vector.shape_cast %32 : vector<8x8xf32> to vector<1x8x8xf32>
    %37 = vector.shape_cast %33 : vector<8x8xf32> to vector<1x8x8xf32>
    %38 = vector.shape_cast %34 : vector<8x8xf32> to vector<1x8x8xf32>
    %39 = vector.shape_cast %35 : vector<8x8xf32> to vector<1x8x8xf32>
    %40 = tpu.concatenate %36, %37, %38, %39 in 0 : vector<1x8x8xf32>, vector<1x8x8xf32>, vector<1x8x8xf32>, vector<1x8x8xf32> -> vector<4x8x8xf32>
    "tpu.trace_start"() <{level = 10 : i32, message = "hqd,hkd->hqk"}> : () -> ()
    %cst_13 = arith.constant dense<0.000000e+00> : vector<4x8x8xf32>
    %41 = tpu.matmul %22, %31, %cst_13 {dimension_numbers = #tpu.dot_dimension_numbers<[2], [2], [1], [1], [0, 0, 0, 1, 1, 1], [0], [0]>} : vector<4x8x8xf32>, vector<4x8x8xf32>, vector<4x8x8xf32> -> vector<4x8x8xf32>
    "tpu.trace_stop"() : () -> ()
    %42 = vector.broadcast %5 : vector<1x1x8xf32> to vector<4x8x8xf32>
    %43 = arith.addf %41, %42 : vector<4x8x8xf32>
    %cst_14 = arith.constant dense<0xFF800000> : vector<4x8xf32>
    %44 = vector.multi_reduction <maximumf>, %43, %cst_14 [2] : vector<4x8x8xf32> to vector<4x8xf32>
    %45 = vector.shape_cast %44 : vector<4x8xf32> to vector<4x8x1xf32>
    %46 = vector.broadcast %45 : vector<4x8x1xf32> to vector<4x8x8xf32>
    %47 = arith.subf %43, %46 : vector<4x8x8xf32>
    %48 = math.exp %47 : vector<4x8x8xf32>
    %cst_15 = arith.constant dense<0.000000e+00> : vector<4x8xf32>
    %49 = vector.multi_reduction <add>, %48, %cst_15 [2] : vector<4x8x8xf32> to vector<4x8xf32>
    %50 = vector.shape_cast %49 : vector<4x8xf32> to vector<4x8x1xf32>
    %51 = tpu.reciprocal %50 {approx = true} : vector<4x8x1xf32> -> vector<4x8x1xf32>
    %52 = vector.broadcast %51 : vector<4x8x1xf32> to vector<4x8x8xf32>
    %53 = arith.mulf %48, %52 : vector<4x8x8xf32>
    "tpu.trace_start"() <{level = 10 : i32, message = "hqk,hkd->hqd"}> : () -> ()
    %cst_16 = arith.constant dense<0.000000e+00> : vector<4x8x8xf32>
    %54 = tpu.matmul %53, %40, %cst_16 {dimension_numbers = #tpu.dot_dimension_numbers<[2], [1], [1], [2], [0, 0, 0, 1, 1, 2], [0], [0]>} : vector<4x8x8xf32>, vector<4x8x8xf32>, vector<4x8x8xf32> -> vector<4x8x8xf32>
    "tpu.trace_stop"() : () -> ()
    %55 = vector.extract_strided_slice %54 {offsets = [0, 0, 0], sizes = [1, 8, 8], strides = [1, 1, 1]} : vector<4x8x8xf32> to vector<1x8x8xf32>
    %56 = vector.shape_cast %55 : vector<1x8x8xf32> to vector<8x8xf32>
    %57 = vector.extract_strided_slice %54 {offsets = [1, 0, 0], sizes = [1, 8, 8], strides = [1, 1, 1]} : vector<4x8x8xf32> to vector<1x8x8xf32>
    %58 = vector.shape_cast %57 : vector<1x8x8xf32> to vector<8x8xf32>
    %59 = vector.extract_strided_slice %54 {offsets = [2, 0, 0], sizes = [1, 8, 8], strides = [1, 1, 1]} : vector<4x8x8xf32> to vector<1x8x8xf32>
    %60 = vector.shape_cast %59 : vector<1x8x8xf32> to vector<8x8xf32>
    %61 = vector.extract_strided_slice %54 {offsets = [3, 0, 0], sizes = [1, 8, 8], strides = [1, 1, 1]} : vector<4x8x8xf32> to vector<1x8x8xf32>
    %62 = vector.shape_cast %61 : vector<1x8x8xf32> to vector<8x8xf32>
    %63 = tpu.concatenate %56, %58, %60, %62 in 1 : vector<8x8xf32>, vector<8x8xf32>, vector<8x8xf32>, vector<8x8xf32> -> vector<8x32xf32>
    %c0_17 = arith.constant 0 : index
    %c0_18 = arith.constant 0 : index
    %c0_19 = arith.constant 0 : index
    %64 = vector.load %arg5[%c0_17, %c0_18, %c0_19] : memref<2x32x32xf32, #tpu.memory_space<vmem>>, vector<1x32x32xf32>
    %65 = vector.shape_cast %64 : vector<1x32x32xf32> to vector<32x32xf32>
    %cst_20 = arith.constant dense<0.000000e+00> : vector<8x32xf32>
    %66 = tpu.matmul %63, %65, %cst_20 {dimension_numbers = #tpu.dot_dimension_numbers<[1], [0], [0], [1], [0, 0, 1, 1], [], []>} : vector<8x32xf32>, vector<32x32xf32>, vector<8x32xf32> -> vector<8x32xf32>
    %c0_21 = arith.constant 0 : index
    %c0_22 = arith.constant 0 : index
    %c0_23 = arith.constant 0 : index
    %67 = vector.load %arg6[%c0_21, %c0_22, %c0_23] : memref<2x1x32xf32, #tpu.memory_space<vmem>>, vector<1x1x32xf32>
    %68 = vector.shape_cast %67 : vector<1x1x32xf32> to vector<1x32xf32>
    %69 = vector.broadcast %68 : vector<1x32xf32> to vector<8x32xf32>
    %70 = arith.addf %66, %69 : vector<8x32xf32>
    %71 = arith.addf %6, %70 : vector<8x32xf32>
    %c0_24 = arith.constant 0 : index
    %c0_25 = arith.constant 0 : index
    %c0_26 = arith.constant 0 : index
    %72 = vector.load %arg11[%c0_24, %c0_25, %c0_26] : memref<2x1x32xf32, #tpu.memory_space<vmem>>, vector<1x1x32xf32>
    %73 = vector.shape_cast %72 : vector<1x1x32xf32> to vector<1x32xf32>
    %c0_27 = arith.constant 0 : index
    %c0_28 = arith.constant 0 : index
    %c0_29 = arith.constant 0 : index
    %74 = vector.load %arg12[%c0_27, %c0_28, %c0_29] : memref<2x1x32xf32, #tpu.memory_space<vmem>>, vector<1x1x32xf32>
    %75 = vector.shape_cast %74 : vector<1x1x32xf32> to vector<1x32xf32>
    %cst_30 = arith.constant dense<0.000000e+00> : vector<8xf32>
    %76 = vector.multi_reduction <add>, %71, %cst_30 [1] : vector<8x32xf32> to vector<8xf32>
    %77 = vector.shape_cast %76 : vector<8xf32> to vector<8x1xf32>
    %cst_31 = arith.constant 3.200000e+01 : f32
    %78 = vector.broadcast %cst_31 : f32 to vector<8x1xf32>
    %79 = arith.divf %77, %78 : vector<8x1xf32>
    %80 = vector.broadcast %79 : vector<8x1xf32> to vector<8x32xf32>
    %81 = arith.subf %71, %80 : vector<8x32xf32>
    %82 = arith.mulf %81, %81 : vector<8x32xf32>
    %cst_32 = arith.constant dense<0.000000e+00> : vector<8xf32>
    %83 = vector.multi_reduction <add>, %82, %cst_32 [1] : vector<8x32xf32> to vector<8xf32>
    %84 = vector.shape_cast %83 : vector<8xf32> to vector<8x1xf32>
    %cst_33 = arith.constant 3.200000e+01 : f32
    %85 = vector.broadcast %cst_33 : f32 to vector<8x1xf32>
    %86 = arith.divf %84, %85 : vector<8x1xf32>
    %87 = vector.broadcast %79 : vector<8x1xf32> to vector<8x32xf32>
    %88 = arith.subf %71, %87 : vector<8x32xf32>
    %cst_34 = arith.constant 9.99999974E-6 : f32
    %89 = vector.broadcast %cst_34 : f32 to vector<8x1xf32>
    %90 = arith.addf %86, %89 : vector<8x1xf32>
    %91 = math.rsqrt %90 : vector<8x1xf32>
    %92 = vector.broadcast %91 : vector<8x1xf32> to vector<8x32xf32>
    %93 = arith.mulf %88, %92 : vector<8x32xf32>
    %94 = vector.broadcast %73 : vector<1x32xf32> to vector<8x32xf32>
    %95 = arith.mulf %93, %94 : vector<8x32xf32>
    %96 = vector.broadcast %75 : vector<1x32xf32> to vector<8x32xf32>
    %97 = arith.addf %95, %96 : vector<8x32xf32>
    %c0_35 = arith.constant 0 : index
    %c0_36 = arith.constant 0 : index
    %c0_37 = arith.constant 0 : index
    %98 = vector.load %arg7[%c0_35, %c0_36, %c0_37] : memref<2x32x64xf32, #tpu.memory_space<vmem>>, vector<1x32x64xf32>
    %99 = vector.shape_cast %98 : vector<1x32x64xf32> to vector<32x64xf32>
    %cst_38 = arith.constant dense<0.000000e+00> : vector<8x64xf32>
    %100 = tpu.matmul %97, %99, %cst_38 {dimension_numbers = #tpu.dot_dimension_numbers<[1], [0], [0], [1], [0, 0, 1, 1], [], []>} : vector<8x32xf32>, vector<32x64xf32>, vector<8x64xf32> -> vector<8x64xf32>
    %c0_39 = arith.constant 0 : index
    %c0_40 = arith.constant 0 : index
    %c0_41 = arith.constant 0 : index
    %101 = vector.load %arg8[%c0_39, %c0_40, %c0_41] : memref<2x1x64xf32, #tpu.memory_space<vmem>>, vector<1x1x64xf32>
    %102 = vector.shape_cast %101 : vector<1x1x64xf32> to vector<1x64xf32>
    %103 = vector.broadcast %102 : vector<1x64xf32> to vector<8x64xf32>
    %104 = arith.addf %100, %103 : vector<8x64xf32>
    %cst_42 = arith.constant 0.000000e+00 : f32
    %105 = vector.broadcast %cst_42 : f32 to vector<8x64xf32>
    %106 = arith.maximumf %104, %105 : vector<8x64xf32>
    %c0_43 = arith.constant 0 : index
    %c0_44 = arith.constant 0 : index
    %c0_45 = arith.constant 0 : index
    %107 = vector.load %arg9[%c0_43, %c0_44, %c0_45] : memref<2x64x32xf32, #tpu.memory_space<vmem>>, vector<1x64x32xf32>
    %108 = vector.shape_cast %107 : vector<1x64x32xf32> to vector<64x32xf32>
    %cst_46 = arith.constant dense<0.000000e+00> : vector<8x32xf32>
    %109 = tpu.matmul %106, %108, %cst_46 {dimension_numbers = #tpu.dot_dimension_numbers<[1], [0], [0], [1], [0, 0, 1, 1], [], []>} : vector<8x64xf32>, vector<64x32xf32>, vector<8x32xf32> -> vector<8x32xf32>
    %c0_47 = arith.constant 0 : index
    %c0_48 = arith.constant 0 : index
    %c0_49 = arith.constant 0 : index
    %110 = vector.load %arg10[%c0_47, %c0_48, %c0_49] : memref<2x1x32xf32, #tpu.memory_space<vmem>>, vector<1x1x32xf32>
    %111 = vector.shape_cast %110 : vector<1x1x32xf32> to vector<1x32xf32>
    %112 = vector.broadcast %111 : vector<1x32xf32> to vector<8x32xf32>
    %113 = arith.addf %109, %112 : vector<8x32xf32>
    %114 = arith.addf %97, %113 : vector<8x32xf32>
    %c0_50 = arith.constant 0 : index
    %c0_51 = arith.constant 0 : index
    %c0_52 = arith.constant 0 : index
    %115 = vector.load %arg13[%c0_50, %c0_51, %c0_52] : memref<2x1x32xf32, #tpu.memory_space<vmem>>, vector<1x1x32xf32>
    %116 = vector.shape_cast %115 : vector<1x1x32xf32> to vector<1x32xf32>
    %c0_53 = arith.constant 0 : index
    %c0_54 = arith.constant 0 : index
    %c0_55 = arith.constant 0 : index
    %117 = vector.load %arg14[%c0_53, %c0_54, %c0_55] : memref<2x1x32xf32, #tpu.memory_space<vmem>>, vector<1x1x32xf32>
    %118 = vector.shape_cast %117 : vector<1x1x32xf32> to vector<1x32xf32>
    %cst_56 = arith.constant dense<0.000000e+00> : vector<8xf32>
    %119 = vector.multi_reduction <add>, %114, %cst_56 [1] : vector<8x32xf32> to vector<8xf32>
    %120 = vector.shape_cast %119 : vector<8xf32> to vector<8x1xf32>
    %cst_57 = arith.constant 3.200000e+01 : f32
    %121 = vector.broadcast %cst_57 : f32 to vector<8x1xf32>
    %122 = arith.divf %120, %121 : vector<8x1xf32>
    %123 = vector.broadcast %122 : vector<8x1xf32> to vector<8x32xf32>
    %124 = arith.subf %114, %123 : vector<8x32xf32>
    %125 = arith.mulf %124, %124 : vector<8x32xf32>
    %cst_58 = arith.constant dense<0.000000e+00> : vector<8xf32>
    %126 = vector.multi_reduction <add>, %125, %cst_58 [1] : vector<8x32xf32> to vector<8xf32>
    %127 = vector.shape_cast %126 : vector<8xf32> to vector<8x1xf32>
    %cst_59 = arith.constant 3.200000e+01 : f32
    %128 = vector.broadcast %cst_59 : f32 to vector<8x1xf32>
    %129 = arith.divf %127, %128 : vector<8x1xf32>
    %130 = vector.broadcast %122 : vector<8x1xf32> to vector<8x32xf32>
    %131 = arith.subf %114, %130 : vector<8x32xf32>
    %cst_60 = arith.constant 9.99999974E-6 : f32
    %132 = vector.broadcast %cst_60 : f32 to vector<8x1xf32>
    %133 = arith.addf %129, %132 : vector<8x1xf32>
    %134 = math.rsqrt %133 : vector<8x1xf32>
    %135 = vector.broadcast %134 : vector<8x1xf32> to vector<8x32xf32>
    %136 = arith.mulf %131, %135 : vector<8x32xf32>
    %137 = vector.broadcast %116 : vector<1x32xf32> to vector<8x32xf32>
    %138 = arith.mulf %136, %137 : vector<8x32xf32>
    %139 = vector.broadcast %118 : vector<1x32xf32> to vector<8x32xf32>
    %140 = arith.addf %138, %139 : vector<8x32xf32>
    %c1 = arith.constant 1 : index
    %c0_61 = arith.constant 0 : index
    %c0_62 = arith.constant 0 : index
    %141 = vector.load %arg3[%c1, %c0_61, %c0_62] : memref<2x32x96xf32, #tpu.memory_space<vmem>>, vector<1x32x96xf32>
    %142 = vector.shape_cast %141 : vector<1x32x96xf32> to vector<32x96xf32>
    %cst_63 = arith.constant dense<0.000000e+00> : vector<8x96xf32>
    %143 = tpu.matmul %140, %142, %cst_63 {dimension_numbers = #tpu.dot_dimension_numbers<[1], [0], [0], [1], [0, 0, 1, 1], [], []>} : vector<8x32xf32>, vector<32x96xf32>, vector<8x96xf32> -> vector<8x96xf32>
    %c1_64 = arith.constant 1 : index
    %c0_65 = arith.constant 0 : index
    %c0_66 = arith.constant 0 : index
    %144 = vector.load %arg4[%c1_64, %c0_65, %c0_66] : memref<2x1x96xf32, #tpu.memory_space<vmem>>, vector<1x1x96xf32>
    %145 = vector.shape_cast %144 : vector<1x1x96xf32> to vector<1x96xf32>
    %146 = vector.broadcast %145 : vector<1x96xf32> to vector<8x96xf32>
    %147 = arith.addf %143, %146 : vector<8x96xf32>
    %148 = vector.extract_strided_slice %147 {offsets = [0, 0], sizes = [8, 8], strides = [1, 1]} : vector<8x96xf32> to vector<8x8xf32>
    %149 = vector.extract_strided_slice %147 {offsets = [0, 8], sizes = [8, 8], strides = [1, 1]} : vector<8x96xf32> to vector<8x8xf32>
    %150 = vector.extract_strided_slice %147 {offsets = [0, 16], sizes = [8, 8], strides = [1, 1]} : vector<8x96xf32> to vector<8x8xf32>
    %151 = vector.extract_strided_slice %147 {offsets = [0, 24], sizes = [8, 8], strides = [1, 1]} : vector<8x96xf32> to vector<8x8xf32>
    %152 = vector.shape_cast %148 : vector<8x8xf32> to vector<1x8x8xf32>
    %153 = vector.shape_cast %149 : vector<8x8xf32> to vector<1x8x8xf32>
    %154 = vector.shape_cast %150 : vector<8x8xf32> to vector<1x8x8xf32>
    %155 = vector.shape_cast %151 : vector<8x8xf32> to vector<1x8x8xf32>
    %156 = tpu.concatenate %152, %153, %154, %155 in 0 : vector<1x8x8xf32>, vector<1x8x8xf32>, vector<1x8x8xf32>, vector<1x8x8xf32> -> vector<4x8x8xf32>
    %157 = vector.extract_strided_slice %147 {offsets = [0, 32], sizes = [8, 8], strides = [1, 1]} : vector<8x96xf32> to vector<8x8xf32>
    %158 = vector.extract_strided_slice %147 {offsets = [0, 40], sizes = [8, 8], strides = [1, 1]} : vector<8x96xf32> to vector<8x8xf32>
    %159 = vector.extract_strided_slice %147 {offsets = [0, 48], sizes = [8, 8], strides = [1, 1]} : vector<8x96xf32> to vector<8x8xf32>
    %160 = vector.extract_strided_slice %147 {offsets = [0, 56], sizes = [8, 8], strides = [1, 1]} : vector<8x96xf32> to vector<8x8xf32>
    %161 = vector.shape_cast %157 : vector<8x8xf32> to vector<1x8x8xf32>
    %162 = vector.shape_cast %158 : vector<8x8xf32> to vector<1x8x8xf32>
    %163 = vector.shape_cast %159 : vector<8x8xf32> to vector<1x8x8xf32>
    %164 = vector.shape_cast %160 : vector<8x8xf32> to vector<1x8x8xf32>
    %165 = tpu.concatenate %161, %162, %163, %164 in 0 : vector<1x8x8xf32>, vector<1x8x8xf32>, vector<1x8x8xf32>, vector<1x8x8xf32> -> vector<4x8x8xf32>
    %166 = vector.extract_strided_slice %147 {offsets = [0, 64], sizes = [8, 8], strides = [1, 1]} : vector<8x96xf32> to vector<8x8xf32>
    %167 = vector.extract_strided_slice %147 {offsets = [0, 72], sizes = [8, 8], strides = [1, 1]} : vector<8x96xf32> to vector<8x8xf32>
    %168 = vector.extract_strided_slice %147 {offsets = [0, 80], sizes = [8, 8], strides = [1, 1]} : vector<8x96xf32> to vector<8x8xf32>
    %169 = vector.extract_strided_slice %147 {offsets = [0, 88], sizes = [8, 8], strides = [1, 1]} : vector<8x96xf32> to vector<8x8xf32>
    %170 = vector.shape_cast %166 : vector<8x8xf32> to vector<1x8x8xf32>
    %171 = vector.shape_cast %167 : vector<8x8xf32> to vector<1x8x8xf32>
    %172 = vector.shape_cast %168 : vector<8x8xf32> to vector<1x8x8xf32>
    %173 = vector.shape_cast %169 : vector<8x8xf32> to vector<1x8x8xf32>
    %174 = tpu.concatenate %170, %171, %172, %173 in 0 : vector<1x8x8xf32>, vector<1x8x8xf32>, vector<1x8x8xf32>, vector<1x8x8xf32> -> vector<4x8x8xf32>
    "tpu.trace_start"() <{level = 10 : i32, message = "hqd,hkd->hqk"}> : () -> ()
    %cst_67 = arith.constant dense<0.000000e+00> : vector<4x8x8xf32>
    %175 = tpu.matmul %156, %165, %cst_67 {dimension_numbers = #tpu.dot_dimension_numbers<[2], [2], [1], [1], [0, 0, 0, 1, 1, 1], [0], [0]>} : vector<4x8x8xf32>, vector<4x8x8xf32>, vector<4x8x8xf32> -> vector<4x8x8xf32>
    "tpu.trace_stop"() : () -> ()
    %176 = vector.broadcast %5 : vector<1x1x8xf32> to vector<4x8x8xf32>
    %177 = arith.addf %175, %176 : vector<4x8x8xf32>
    %cst_68 = arith.constant dense<0xFF800000> : vector<4x8xf32>
    %178 = vector.multi_reduction <maximumf>, %177, %cst_68 [2] : vector<4x8x8xf32> to vector<4x8xf32>
    %179 = vector.shape_cast %178 : vector<4x8xf32> to vector<4x8x1xf32>
    %180 = vector.broadcast %179 : vector<4x8x1xf32> to vector<4x8x8xf32>
    %181 = arith.subf %177, %180 : vector<4x8x8xf32>
    %182 = math.exp %181 : vector<4x8x8xf32>
    %cst_69 = arith.constant dense<0.000000e+00> : vector<4x8xf32>
    %183 = vector.multi_reduction <add>, %182, %cst_69 [2] : vector<4x8x8xf32> to vector<4x8xf32>
    %184 = vector.shape_cast %183 : vector<4x8xf32> to vector<4x8x1xf32>
    %185 = tpu.reciprocal %184 {approx = true} : vector<4x8x1xf32> -> vector<4x8x1xf32>
    %186 = vector.broadcast %185 : vector<4x8x1xf32> to vector<4x8x8xf32>
    %187 = arith.mulf %182, %186 : vector<4x8x8xf32>
    "tpu.trace_start"() <{level = 10 : i32, message = "hqk,hkd->hqd"}> : () -> ()
    %cst_70 = arith.constant dense<0.000000e+00> : vector<4x8x8xf32>
    %188 = tpu.matmul %187, %174, %cst_70 {dimension_numbers = #tpu.dot_dimension_numbers<[2], [1], [1], [2], [0, 0, 0, 1, 1, 2], [0], [0]>} : vector<4x8x8xf32>, vector<4x8x8xf32>, vector<4x8x8xf32> -> vector<4x8x8xf32>
    "tpu.trace_stop"() : () -> ()
    %189 = vector.extract_strided_slice %188 {offsets = [0, 0, 0], sizes = [1, 8, 8], strides = [1, 1, 1]} : vector<4x8x8xf32> to vector<1x8x8xf32>
    %190 = vector.shape_cast %189 : vector<1x8x8xf32> to vector<8x8xf32>
    %191 = vector.extract_strided_slice %188 {offsets = [1, 0, 0], sizes = [1, 8, 8], strides = [1, 1, 1]} : vector<4x8x8xf32> to vector<1x8x8xf32>
    %192 = vector.shape_cast %191 : vector<1x8x8xf32> to vector<8x8xf32>
    %193 = vector.extract_strided_slice %188 {offsets = [2, 0, 0], sizes = [1, 8, 8], strides = [1, 1, 1]} : vector<4x8x8xf32> to vector<1x8x8xf32>
    %194 = vector.shape_cast %193 : vector<1x8x8xf32> to vector<8x8xf32>
    %195 = vector.extract_strided_slice %188 {offsets = [3, 0, 0], sizes = [1, 8, 8], strides = [1, 1, 1]} : vector<4x8x8xf32> to vector<1x8x8xf32>
    %196 = vector.shape_cast %195 : vector<1x8x8xf32> to vector<8x8xf32>
    %197 = tpu.concatenate %190, %192, %194, %196 in 1 : vector<8x8xf32>, vector<8x8xf32>, vector<8x8xf32>, vector<8x8xf32> -> vector<8x32xf32>
    %c1_71 = arith.constant 1 : index
    %c0_72 = arith.constant 0 : index
    %c0_73 = arith.constant 0 : index
    %198 = vector.load %arg5[%c1_71, %c0_72, %c0_73] : memref<2x32x32xf32, #tpu.memory_space<vmem>>, vector<1x32x32xf32>
    %199 = vector.shape_cast %198 : vector<1x32x32xf32> to vector<32x32xf32>
    %cst_74 = arith.constant dense<0.000000e+00> : vector<8x32xf32>
    %200 = tpu.matmul %197, %199, %cst_74 {dimension_numbers = #tpu.dot_dimension_numbers<[1], [0], [0], [1], [0, 0, 1, 1], [], []>} : vector<8x32xf32>, vector<32x32xf32>, vector<8x32xf32> -> vector<8x32xf32>
    %c1_75 = arith.constant 1 : index
    %c0_76 = arith.constant 0 : index
    %c0_77 = arith.constant 0 : index
    %201 = vector.load %arg6[%c1_75, %c0_76, %c0_77] : memref<2x1x32xf32, #tpu.memory_space<vmem>>, vector<1x1x32xf32>
    %202 = vector.shape_cast %201 : vector<1x1x32xf32> to vector<1x32xf32>
    %203 = vector.broadcast %202 : vector<1x32xf32> to vector<8x32xf32>
    %204 = arith.addf %200, %203 : vector<8x32xf32>
    %205 = arith.addf %140, %204 : vector<8x32xf32>
    %c1_78 = arith.constant 1 : index
    %c0_79 = arith.constant 0 : index
    %c0_80 = arith.constant 0 : index
    %206 = vector.load %arg11[%c1_78, %c0_79, %c0_80] : memref<2x1x32xf32, #tpu.memory_space<vmem>>, vector<1x1x32xf32>
    %207 = vector.shape_cast %206 : vector<1x1x32xf32> to vector<1x32xf32>
    %c1_81 = arith.constant 1 : index
    %c0_82 = arith.constant 0 : index
    %c0_83 = arith.constant 0 : index
    %208 = vector.load %arg12[%c1_81, %c0_82, %c0_83] : memref<2x1x32xf32, #tpu.memory_space<vmem>>, vector<1x1x32xf32>
    %209 = vector.shape_cast %208 : vector<1x1x32xf32> to vector<1x32xf32>
    %cst_84 = arith.constant dense<0.000000e+00> : vector<8xf32>
    %210 = vector.multi_reduction <add>, %205, %cst_84 [1] : vector<8x32xf32> to vector<8xf32>
    %211 = vector.shape_cast %210 : vector<8xf32> to vector<8x1xf32>
    %cst_85 = arith.constant 3.200000e+01 : f32
    %212 = vector.broadcast %cst_85 : f32 to vector<8x1xf32>
    %213 = arith.divf %211, %212 : vector<8x1xf32>
    %214 = vector.broadcast %213 : vector<8x1xf32> to vector<8x32xf32>
    %215 = arith.subf %205, %214 : vector<8x32xf32>
    %216 = arith.mulf %215, %215 : vector<8x32xf32>
    %cst_86 = arith.constant dense<0.000000e+00> : vector<8xf32>
    %217 = vector.multi_reduction <add>, %216, %cst_86 [1] : vector<8x32xf32> to vector<8xf32>
    %218 = vector.shape_cast %217 : vector<8xf32> to vector<8x1xf32>
    %cst_87 = arith.constant 3.200000e+01 : f32
    %219 = vector.broadcast %cst_87 : f32 to vector<8x1xf32>
    %220 = arith.divf %218, %219 : vector<8x1xf32>
    %221 = vector.broadcast %213 : vector<8x1xf32> to vector<8x32xf32>
    %222 = arith.subf %205, %221 : vector<8x32xf32>
    %cst_88 = arith.constant 9.99999974E-6 : f32
    %223 = vector.broadcast %cst_88 : f32 to vector<8x1xf32>
    %224 = arith.addf %220, %223 : vector<8x1xf32>
    %225 = math.rsqrt %224 : vector<8x1xf32>
    %226 = vector.broadcast %225 : vector<8x1xf32> to vector<8x32xf32>
    %227 = arith.mulf %222, %226 : vector<8x32xf32>
    %228 = vector.broadcast %207 : vector<1x32xf32> to vector<8x32xf32>
    %229 = arith.mulf %227, %228 : vector<8x32xf32>
    %230 = vector.broadcast %209 : vector<1x32xf32> to vector<8x32xf32>
    %231 = arith.addf %229, %230 : vector<8x32xf32>
    %c1_89 = arith.constant 1 : index
    %c0_90 = arith.constant 0 : index
    %c0_91 = arith.constant 0 : index
    %232 = vector.load %arg7[%c1_89, %c0_90, %c0_91] : memref<2x32x64xf32, #tpu.memory_space<vmem>>, vector<1x32x64xf32>
    %233 = vector.shape_cast %232 : vector<1x32x64xf32> to vector<32x64xf32>
    %cst_92 = arith.constant dense<0.000000e+00> : vector<8x64xf32>
    %234 = tpu.matmul %231, %233, %cst_92 {dimension_numbers = #tpu.dot_dimension_numbers<[1], [0], [0], [1], [0, 0, 1, 1], [], []>} : vector<8x32xf32>, vector<32x64xf32>, vector<8x64xf32> -> vector<8x64xf32>
    %c1_93 = arith.constant 1 : index
    %c0_94 = arith.constant 0 : index
    %c0_95 = arith.constant 0 : index
    %235 = vector.load %arg8[%c1_93, %c0_94, %c0_95] : memref<2x1x64xf32, #tpu.memory_space<vmem>>, vector<1x1x64xf32>
    %236 = vector.shape_cast %235 : vector<1x1x64xf32> to vector<1x64xf32>
    %237 = vector.broadcast %236 : vector<1x64xf32> to vector<8x64xf32>
    %238 = arith.addf %234, %237 : vector<8x64xf32>
    %cst_96 = arith.constant 0.000000e+00 : f32
    %239 = vector.broadcast %cst_96 : f32 to vector<8x64xf32>
    %240 = arith.maximumf %238, %239 : vector<8x64xf32>
    %c1_97 = arith.constant 1 : index
    %c0_98 = arith.constant 0 : index
    %c0_99 = arith.constant 0 : index
    %241 = vector.load %arg9[%c1_97, %c0_98, %c0_99] : memref<2x64x32xf32, #tpu.memory_space<vmem>>, vector<1x64x32xf32>
    %242 = vector.shape_cast %241 : vector<1x64x32xf32> to vector<64x32xf32>
    %cst_100 = arith.constant dense<0.000000e+00> : vector<8x32xf32>
    %243 = tpu.matmul %240, %242, %cst_100 {dimension_numbers = #tpu.dot_dimension_numbers<[1], [0], [0], [1], [0, 0, 1, 1], [], []>} : vector<8x64xf32>, vector<64x32xf32>, vector<8x32xf32> -> vector<8x32xf32>
    %c1_101 = arith.constant 1 : index
    %c0_102 = arith.constant 0 : index
    %c0_103 = arith.constant 0 : index
    %244 = vector.load %arg10[%c1_101, %c0_102, %c0_103] : memref<2x1x32xf32, #tpu.memory_space<vmem>>, vector<1x1x32xf32>
    %245 = vector.shape_cast %244 : vector<1x1x32xf32> to vector<1x32xf32>
    %246 = vector.broadcast %245 : vector<1x32xf32> to vector<8x32xf32>
    %247 = arith.addf %243, %246 : vector<8x32xf32>
    %248 = arith.addf %231, %247 : vector<8x32xf32>
    %c1_104 = arith.constant 1 : index
    %c0_105 = arith.constant 0 : index
    %c0_106 = arith.constant 0 : index
    %249 = vector.load %arg13[%c1_104, %c0_105, %c0_106] : memref<2x1x32xf32, #tpu.memory_space<vmem>>, vector<1x1x32xf32>
    %250 = vector.shape_cast %249 : vector<1x1x32xf32> to vector<1x32xf32>
    %c1_107 = arith.constant 1 : index
    %c0_108 = arith.constant 0 : index
    %c0_109 = arith.constant 0 : index
    %251 = vector.load %arg14[%c1_107, %c0_108, %c0_109] : memref<2x1x32xf32, #tpu.memory_space<vmem>>, vector<1x1x32xf32>
    %252 = vector.shape_cast %251 : vector<1x1x32xf32> to vector<1x32xf32>
    %cst_110 = arith.constant dense<0.000000e+00> : vector<8xf32>
    %253 = vector.multi_reduction <add>, %248, %cst_110 [1] : vector<8x32xf32> to vector<8xf32>
    %254 = vector.shape_cast %253 : vector<8xf32> to vector<8x1xf32>
    %cst_111 = arith.constant 3.200000e+01 : f32
    %255 = vector.broadcast %cst_111 : f32 to vector<8x1xf32>
    %256 = arith.divf %254, %255 : vector<8x1xf32>
    %257 = vector.broadcast %256 : vector<8x1xf32> to vector<8x32xf32>
    %258 = arith.subf %248, %257 : vector<8x32xf32>
    %259 = arith.mulf %258, %258 : vector<8x32xf32>
    %cst_112 = arith.constant dense<0.000000e+00> : vector<8xf32>
    %260 = vector.multi_reduction <add>, %259, %cst_112 [1] : vector<8x32xf32> to vector<8xf32>
    %261 = vector.shape_cast %260 : vector<8xf32> to vector<8x1xf32>
    %cst_113 = arith.constant 3.200000e+01 : f32
    %262 = vector.broadcast %cst_113 : f32 to vector<8x1xf32>
    %263 = arith.divf %261, %262 : vector<8x1xf32>
    %264 = vector.broadcast %256 : vector<8x1xf32> to vector<8x32xf32>
    %265 = arith.subf %248, %264 : vector<8x32xf32>
    %cst_114 = arith.constant 9.99999974E-6 : f32
    %266 = vector.broadcast %cst_114 : f32 to vector<8x1xf32>
    %267 = arith.addf %263, %266 : vector<8x1xf32>
    %268 = math.rsqrt %267 : vector<8x1xf32>
    %269 = vector.broadcast %268 : vector<8x1xf32> to vector<8x32xf32>
    %270 = arith.mulf %265, %269 : vector<8x32xf32>
    %271 = vector.broadcast %250 : vector<1x32xf32> to vector<8x32xf32>
    %272 = arith.mulf %270, %271 : vector<8x32xf32>
    %273 = vector.broadcast %252 : vector<1x32xf32> to vector<8x32xf32>
    %274 = arith.addf %272, %273 : vector<8x32xf32>
    %c0_115 = arith.constant 0 : index
    %c0_116 = arith.constant 0 : index
    %275 = vector.load %arg15[%c0_115, %c0_116] : memref<1x32xf32, #tpu.memory_space<vmem>>, vector<1x32xf32>
    %c0_117 = arith.constant 0 : index
    %c0_118 = arith.constant 0 : index
    %276 = vector.load %arg16[%c0_117, %c0_118] : memref<1x32xf32, #tpu.memory_space<vmem>>, vector<1x32xf32>
    %cst_119 = arith.constant dense<0.000000e+00> : vector<8xf32>
    %277 = vector.multi_reduction <add>, %274, %cst_119 [1] : vector<8x32xf32> to vector<8xf32>
    %278 = vector.shape_cast %277 : vector<8xf32> to vector<8x1xf32>
    %cst_120 = arith.constant 3.200000e+01 : f32
    %279 = vector.broadcast %cst_120 : f32 to vector<8x1xf32>
    %280 = arith.divf %278, %279 : vector<8x1xf32>
    %281 = vector.broadcast %280 : vector<8x1xf32> to vector<8x32xf32>
    %282 = arith.subf %274, %281 : vector<8x32xf32>
    %283 = arith.mulf %282, %282 : vector<8x32xf32>
    %cst_121 = arith.constant dense<0.000000e+00> : vector<8xf32>
    %284 = vector.multi_reduction <add>, %283, %cst_121 [1] : vector<8x32xf32> to vector<8xf32>
    %285 = vector.shape_cast %284 : vector<8xf32> to vector<8x1xf32>
    %cst_122 = arith.constant 3.200000e+01 : f32
    %286 = vector.broadcast %cst_122 : f32 to vector<8x1xf32>
    %287 = arith.divf %285, %286 : vector<8x1xf32>
    %288 = vector.broadcast %280 : vector<8x1xf32> to vector<8x32xf32>
    %289 = arith.subf %274, %288 : vector<8x32xf32>
    %cst_123 = arith.constant 9.99999974E-6 : f32
    %290 = vector.broadcast %cst_123 : f32 to vector<8x1xf32>
    %291 = arith.addf %287, %290 : vector<8x1xf32>
    %292 = math.rsqrt %291 : vector<8x1xf32>
    %293 = vector.broadcast %292 : vector<8x1xf32> to vector<8x32xf32>
    %294 = arith.mulf %289, %293 : vector<8x32xf32>
    %295 = vector.broadcast %275 : vector<1x32xf32> to vector<8x32xf32>
    %296 = arith.mulf %294, %295 : vector<8x32xf32>
    %297 = vector.broadcast %276 : vector<1x32xf32> to vector<8x32xf32>
    %298 = arith.addf %296, %297 : vector<8x32xf32>
    %c0_124 = arith.constant 0 : index
    %c0_125 = arith.constant 0 : index
    %299 = vector.load %arg17[%c0_124, %c0_125] : memref<8x32xf32, #tpu.memory_space<vmem>>, vector<8x32xf32>
    tpu.vector_store %arg17[%c0_124, %c0_125], %298 {strides = array<i32>} : memref<8x32xf32, #tpu.memory_space<vmem>>, vector<8x32xf32>,
    return
  }
  func.func @transform_0(%arg0: i32) -> (i32, i32) {
    %c0_i32 = arith.constant 0 : i32
    %c0_i32_0 = arith.constant 0 : i32
    return %arg0, %c0_i32 : i32, i32
  }
  func.func @transform_1(%arg0: i32) -> (i32, i32, i32) {
    %c0_i32 = arith.constant 0 : i32
    %c0_i32_0 = arith.constant 0 : i32
    %c0_i32_1 = arith.constant 0 : i32
    return %arg0, %c0_i32, %c0_i32_0 : i32, i32, i32
  }
  func.func @transform_2(%arg0: i32) -> (i32, i32, i32) {
    %c0_i32 = arith.constant 0 : i32
    %c0_i32_0 = arith.constant 0 : i32
    %c0_i32_1 = arith.constant 0 : i32
    %c0_i32_2 = arith.constant 0 : i32
    return %c0_i32, %c0_i32_0, %c0_i32_1 : i32, i32, i32
  }
  func.func @transform_3(%arg0: i32) -> (i32, i32, i32) {
    %c0_i32 = arith.constant 0 : i32
    %c0_i32_0 = arith.constant 0 : i32
    %c0_i32_1 = arith.constant 0 : i32
    %c0_i32_2 = arith.constant 0 : i32
    return %c0_i32, %c0_i32_0, %c0_i32_1 : i32, i32, i32
  }
  func.func @transform_4(%arg0: i32) -> (i32, i32, i32) {
    %c0_i32 = arith.constant 0 : i32
    %c0_i32_0 = arith.constant 0 : i32
    %c0_i32_1 = arith.constant 0 : i32
    %c0_i32_2 = arith.constant 0 : i32
    return %c0_i32, %c0_i32_0, %c0_i32_1 : i32, i32, i32
  }
  func.func @transform_5(%arg0: i32) -> (i32, i32, i32) {
    %c0_i32 = arith.constant 0 : i32
    %c0_i32_0 = arith.constant 0 : i32
    %c0_i32_1 = arith.constant 0 : i32
    %c0_i32_2 = arith.constant 0 : i32
    return %c0_i32, %c0_i32_0, %c0_i32_1 : i32, i32, i32
  }
  func.func @transform_6(%arg0: i32) -> (i32, i32, i32) {
    %c0_i32 = arith.constant 0 : i32
    %c0_i32_0 = arith.constant 0 : i32
    %c0_i32_1 = arith.constant 0 : i32
    %c0_i32_2 = arith.constant 0 : i32
    return %c0_i32, %c0_i32_0, %c0_i32_1 : i32, i32, i32
  }
  func.func @transform_7(%arg0: i32) -> (i32, i32, i32) {
    %c0_i32 = arith.constant 0 : i32
    %c0_i32_0 = arith.constant 0 : i32
    %c0_i32_1 = arith.constant 0 : i32
    %c0_i32_2 = arith.constant 0 : i32
    return %c0_i32, %c0_i32_0, %c0_i32_1 : i32, i32, i32
  }
  func.func @transform_8(%arg0: i32) -> (i32, i32, i32) {
    %c0_i32 = arith.constant 0 : i32
    %c0_i32_0 = arith.constant 0 : i32
    %c0_i32_1 = arith.constant 0 : i32
    %c0_i32_2 = arith.constant 0 : i32
    return %c0_i32, %c0_i32_0, %c0_i32_1 : i32, i32, i32
  }
  func.func @transform_9(%arg0: i32) -> (i32, i32, i32) {
    %c0_i32 = arith.constant 0 : i32
    %c0_i32_0 = arith.constant 0 : i32
    %c0_i32_1 = arith.constant 0 : i32
    %c0_i32_2 = arith.constant 0 : i32
    return %c0_i32, %c0_i32_0, %c0_i32_1 : i32, i32, i32
  }
  func.func @transform_10(%arg0: i32) -> (i32, i32, i32) {
    %c0_i32 = arith.constant 0 : i32
    %c0_i32_0 = arith.constant 0 : i32
    %c0_i32_1 = arith.constant 0 : i32
    %c0_i32_2 = arith.constant 0 : i32
    return %c0_i32, %c0_i32_0, %c0_i32_1 : i32, i32, i32
  }
  func.func @transform_11(%arg0: i32) -> (i32, i32, i32) {
    %c0_i32 = arith.constant 0 : i32
    %c0_i32_0 = arith.constant 0 : i32
    %c0_i32_1 = arith.constant 0 : i32
    %c0_i32_2 = arith.constant 0 : i32
    return %c0_i32, %c0_i32_0, %c0_i32_1 : i32, i32, i32
  }
  func.func @transform_12(%arg0: i32) -> (i32, i32, i32) {
    %c0_i32 = arith.constant 0 : i32
    %c0_i32_0 = arith.constant 0 : i32
    %c0_i32_1 = arith.constant 0 : i32
    %c0_i32_2 = arith.constant 0 : i32
    return %c0_i32, %c0_i32_0, %c0_i32_1 : i32, i32, i32
  }
  func.func @transform_13(%arg0: i32) -> (i32, i32, i32) {
    %c0_i32 = arith.constant 0 : i32
    %c0_i32_0 = arith.constant 0 : i32
    %c0_i32_1 = arith.constant 0 : i32
    %c0_i32_2 = arith.constant 0 : i32
    return %c0_i32, %c0_i32_0, %c0_i32_1 : i32, i32, i32
  }
  func.func @transform_14(%arg0: i32) -> (i32, i32) {
    %c0_i32 = arith.constant 0 : i32
    %c0_i32_0 = arith.constant 0 : i32
    %c0_i32_1 = arith.constant 0 : i32
    return %c0_i32, %c0_i32_0 : i32, i32
  }
  func.func @transform_15(%arg0: i32) -> (i32, i32) {
    %c0_i32 = arith.constant 0 : i32
    %c0_i32_0 = arith.constant 0 : i32
    %c0_i32_1 = arith.constant 0 : i32
    return %c0_i32, %c0_i32_0 : i32, i32
  }
  func.func @transform_16(%arg0: i32) -> (i32, i32) {
    %c0_i32 = arith.constant 0 : i32
    %c0_i32_0 = arith.constant 0 : i32
    return %arg0, %c0_i32 : i32, i32
  }
}

</mosaic_0001>

<llo_original>
// kernel: tpu_custom_call.1
$region0: #{tpu_custom_call.1}
  #allocation0 [shape = 'u32[]', space=smem, size = 0x4, offset = 0x4, fixed_abs, tag = 'smem constant byte address 0x4 - core index']
  #allocation1 [shape = 'u32[72,128]{1,0:T(1,128)}', space=vmem, size = 0x9000, scoped, tag = 'internal scratch']
  %s0 = inlined_call_operand.hbm [shape: f32[16,32], index: 0, kind: input, shape index: {}]
  %s1 = inlined_call_operand.hbm [shape: f32[2,1,8], index: 1, kind: input, shape index: {}]
  %s2 = inlined_call_operand.vmem [shape: f32[2,32,96], index: 2, kind: input, shape index: {}]
  %s3 = inlined_call_operand.vmem [shape: f32[2,1,96], index: 3, kind: input, shape index: {}]
  %s4 = inlined_call_operand.vmem [shape: f32[2,32,32], index: 4, kind: input, shape index: {}]
  %s5 = inlined_call_operand.hbm [shape: f32[2,1,32], index: 5, kind: input, shape index: {}]
  %s6 = inlined_call_operand.vmem [shape: f32[2,32,64], index: 6, kind: input, shape index: {}]
  %s7 = inlined_call_operand.vmem [shape: f32[2,1,64], index: 7, kind: input, shape index: {}]
  %s8 = inlined_call_operand.vmem [shape: f32[2,64,32], index: 8, kind: input, shape index: {}]
  %s9 = inlined_call_operand.vmem [shape: f32[2,1,32], index: 9, kind: input, shape index: {}]
  %s10 = inlined_call_operand.vmem [shape: f32[2,1,32], index: 10, kind: input, shape index: {}]
  %s11 = inlined_call_operand.hbm [shape: f32[2,1,32], index: 11, kind: input, shape index: {}]
  %s12 = inlined_call_operand.vmem [shape: f32[2,1,32], index: 12, kind: input, shape index: {}]
  %s13 = inlined_call_operand.hbm [shape: f32[2,1,32], index: 13, kind: input, shape index: {}]
  %s14 = inlined_call_operand.vmem [shape: f32[1,32], index: 14, kind: input, shape index: {}]
  %s15 = inlined_call_operand.vmem [shape: f32[1,32], index: 15, kind: input, shape index: {}]
  %s16 = inlined_call_operand.hbm [shape: f32[16,32], index: 16, kind: output, shape index: {}]
  %s17 = sld [smem:[#allocation0]]
  $region117: #{tpu_custom_call.1} parent=0
    _
  %s19 = ssub.s32 1, %s17
  %s20 = scalar_select 0, %s19, %s17
  $region1: #{tpu_custom_call.1} parent=0
    #allocation2 [shape = 'u8[8192]{0}', space=vmem, size = 0x2000, scoped, tag = 'input window, operand 0']
    #allocation3 [shape = 's32[2]{0}', space=sflag, size = 0x8, scoped, tag = 'scoped memory for tpu_custom_call.1']
    #allocation4 [shape = 's32[2]{0}', space=sflag, size = 0x8, scoped, tag = 'scoped memory for tpu_custom_call.1']
    #allocation5 [shape = 'u8[1024]{0}', space=vmem, size = 0x400, scoped, tag = 'input window, operand 1']
    #allocation6 [shape = 's32[2]{0}', space=sflag, size = 0x8, scoped, tag = 'scoped memory for tpu_custom_call.1']
    #allocation7 [shape = 'u8[1024]{0}', space=vmem, size = 0x400, scoped, tag = 'input window, operand 5, single buffered']
    #allocation8 [shape = 'u8[1024]{0}', space=vmem, size = 0x400, scoped, tag = 'input window, operand 11, single buffered']
    #allocation9 [shape = 's32[1]{0}', space=sflag, size = 0x4, scoped, tag = 'scoped memory for tpu_custom_call.1']
    #allocation10 [shape = 'u8[1024]{0}', space=vmem, size = 0x400, scoped, tag = 'input window, operand 13, single buffered']
    #allocation11 [shape = 'u8[8192]{0}', space=vmem, size = 0x2000, scoped, tag = 'output window, operand 0']
    %21 = vsyncpa [#allocation3], 0
    %s22 = scalar_lea.sflag [#allocation3], 1
    %23 = vsyncpa %s22, 0
    %24 = vsyncpa [#allocation6], 0
    %s25 = scalar_lea.sflag [#allocation6], 1
    %26 = vsyncpa %s25, 0
    %27 = vsyncpa [#allocation9], 0
    %28 = vsyncpa [#allocation4], 0
    %s29 = scalar_lea.sflag [#allocation4], 1
    %30 = vsyncpa %s29, 0
    loop: start=0, step=1, limit=4
    $region2: #{tpu_custom_call.1} parent=1 // loop_pre_header
      _
    $region3: #{tpu_custom_call.1} parent=1 // loop_header
      %s32 = sphi 0, %s36
      %p33 = scmp.ge.s32.totalorder %s32, 4
      %s42 = sphi 0, %s44
      %s45 = sphi 0, %s42
      %s46 = sphi 0, %s45
      %s62 = sphi 0, %s46
      %s68 = sphi 0, %s70
      %s71 = sphi 0, %s68
      %s72 = sphi 0, %s71
      %s88 = sphi 0, %s72
      %s92 = sphi 0, %s92
      %s94 = sphi 0, %s92
      %s95 = sphi 0, %s94
      %s109 = sphi 0, %s95
      %s113 = sphi 0, %s113
      %s115 = sphi 0, %s113
      %s116 = sphi 0, %s115
      %s130 = sphi 0, %s116
      %s134 = sphi 0, %s134
      %s136 = sphi 0, %s134
      %s137 = sphi 0, %s136
      %s151 = sphi 0, %s137
      %s155 = sphi 0, %s155
      %s157 = sphi 0, %s155
      %s158 = sphi 0, %s157
      %s172 = sphi 0, %s158
      %s176 = sphi 0, %s176
      %s178 = sphi 0, %s176
      %s179 = sphi 0, %s178
      %s193 = sphi 0, %s179
      %s197 = sphi 0, %s197
      %s199 = sphi 0, %s197
      %s200 = sphi 0, %s199
      %s214 = sphi 0, %s200
      %s218 = sphi 0, %s218
      %s220 = sphi 0, %s218
      %s221 = sphi 0, %s220
      %s235 = sphi 0, %s221
      %s239 = sphi 0, %s239
      %s241 = sphi 0, %s239
      %s242 = sphi 0, %s241
      %s256 = sphi 0, %s242
      %s260 = sphi 0, %s260
      %s262 = sphi 0, %s260
      %s263 = sphi 0, %s262
      %s277 = sphi 0, %s263
      %s281 = sphi 0, %s281
      %s283 = sphi 0, %s281
      %s284 = sphi 0, %s283
      %s298 = sphi 0, %s284
      %s302 = sphi 0, %s302
      %s304 = sphi 0, %s302
      %s305 = sphi 0, %s304
      %s319 = sphi 0, %s305
      %s323 = sphi 0, %s323
      %s325 = sphi 0, %s323
      %s326 = sphi 0, %s325
      %s340 = sphi 0, %s326
      %s344 = sphi 0, %s344
      %s346 = sphi 0, %s344
      %s347 = sphi 0, %s346
      %s361 = sphi 0, %s347
      %s365 = sphi 0, %s365
      %s367 = sphi 0, %s365
      %s368 = sphi 0, %s367
      %s382 = sphi 0, %s368
      %s388 = sphi 0, %s390
      %s391 = sphi 0, %s388
      %s392 = sphi 0, %s391
      %s408 = sphi 0, %s392
    $region4: #{tpu_custom_call.1} parent=1 // loop_header_branch
      %35 = sbr.rel (%p33) target = $region8
    $region5: #{tpu_custom_call.1} parent=1 // loop_body
      %s37 = ssub.s32 %s32, 1
      %s38 = ssub.s32 %s32, 2
      %s39 = sadd.s32 %s32, 1
      %s40 = ssub.s32 %s32, %s39
      %p41 = scmp.eq.s32.totalorder %s40, 0
      %s43 = sadd.s32 %s42, 1
      %s44 = scalar_select %p41, %s42, %s43
      %p47 = pneg %p41
      %p48 = scmp.eq.s32.totalorder %s32, 1
      %p49 = por %p47, %p48
      %p50 = scmp.ne.s32.totalorder %s42, %s45
      %p51 = scmp.eq.s32.totalorder %s32, 0
      %p52 = por %p50, %p51
      %p53 = scmp.ne.s32.totalorder %s42, %s45
      %p54 = scmp.eq.s32.totalorder %s37, 1
      %p55 = por %p53, %p54
      %p56 = scmp.ne.s32.totalorder %s45, %s46
      %p57 = scmp.eq.s32.totalorder %s37, 0
      %p58 = por %p56, %p57
      %p59 = scmp.ne.s32.totalorder %s45, %s46
      %p60 = scmp.eq.s32.totalorder %s38, 1
      %p61 = por %p59, %p60
      %p63 = scmp.ne.s32.totalorder %s46, %s62
      %p64 = scmp.eq.s32.totalorder %s38, 0
      %p65 = por %p63, %p64
      %s66 = ssub.s32 %s32, %s39
      %p67 = scmp.eq.s32.totalorder %s66, 0
      %s69 = sadd.s32 %s68, 1
      %s70 = scalar_select %p67, %s68, %s69
      %p73 = pneg %p67
      %p74 = scmp.eq.s32.totalorder %s32, 1
      %p75 = por %p73, %p74
      %p76 = scmp.ne.s32.totalorder %s68, %s71
      %p77 = scmp.eq.s32.totalorder %s32, 0
      %p78 = por %p76, %p77
      %p79 = scmp.ne.s32.totalorder %s68, %s71
      %p80 = scmp.eq.s32.totalorder %s37, 1
      %p81 = por %p79, %p80
      %p82 = scmp.ne.s32.totalorder %s71, %s72
      %p83 = scmp.eq.s32.totalorder %s37, 0
      %p84 = por %p82, %p83
      %p85 = scmp.ne.s32.totalorder %s71, %s72
      %p86 = scmp.eq.s32.totalorder %s38, 1
      %p87 = por %p85, %p86
      %p89 = scmp.ne.s32.totalorder %s72, %s88
      %p90 = scmp.eq.s32.totalorder %s38, 0
      %p91 = por %p89, %p90
      %s93 = sadd.s32 %s92, 1
      %p96 = scmp.eq.s32.totalorder %s32, 1
      %p97 = scmp.ne.s32.totalorder %s92, %s94
      %p98 = scmp.eq.s32.totalorder %s32, 0
      %p99 = por %p97, %p98
      %p100 = scmp.ne.s32.totalorder %s92, %s94
      %p101 = scmp.eq.s32.totalorder %s37, 1
      %p102 = por %p100, %p101
      %p103 = scmp.ne.s32.totalorder %s94, %s95
      %p104 = scmp.eq.s32.totalorder %s37, 0
      %p105 = por %p103, %p104
      %p106 = scmp.ne.s32.totalorder %s94, %s95
      %p107 = scmp.eq.s32.totalorder %s38, 1
      %p108 = por %p106, %p107
      %p110 = scmp.ne.s32.totalorder %s95, %s109
      %p111 = scmp.eq.s32.totalorder %s38, 0
      %p112 = por %p110, %p111
      %s114 = sadd.s32 %s113, 1
      %p117 = scmp.eq.s32.totalorder %s32, 1
      %p118 = scmp.ne.s32.totalorder %s113, %s115
      %p119 = scmp.eq.s32.totalorder %s32, 0
      %p120 = por %p118, %p119
      %p121 = scmp.ne.s32.totalorder %s113, %s115
      %p122 = scmp.eq.s32.totalorder %s37, 1
      %p123 = por %p121, %p122
      %p124 = scmp.ne.s32.totalorder %s115, %s116
      %p125 = scmp.eq.s32.totalorder %s37, 0
      %p126 = por %p124, %p125
      %p127 = scmp.ne.s32.totalorder %s115, %s116
      %p128 = scmp.eq.s32.totalorder %s38, 1
      %p129 = por %p127, %p128
      %p131 = scmp.ne.s32.totalorder %s116, %s130
      %p132 = scmp.eq.s32.totalorder %s38, 0
      %p133 = por %p131, %p132
      %s135 = sadd.s32 %s134, 1
      %p138 = scmp.eq.s32.totalorder %s32, 1
      %p139 = scmp.ne.s32.totalorder %s134, %s136
      %p140 = scmp.eq.s32.totalorder %s32, 0
      %p141 = por %p139, %p140
      %p142 = scmp.ne.s32.totalorder %s134, %s136
      %p143 = scmp.eq.s32.totalorder %s37, 1
      %p144 = por %p142, %p143
      %p145 = scmp.ne.s32.totalorder %s136, %s137
      %p146 = scmp.eq.s32.totalorder %s37, 0
      %p147 = por %p145, %p146
      %p148 = scmp.ne.s32.totalorder %s136, %s137
      %p149 = scmp.eq.s32.totalorder %s38, 1
      %p150 = por %p148, %p149
      %p152 = scmp.ne.s32.totalorder %s137, %s151
      %p153 = scmp.eq.s32.totalorder %s38, 0
      %p154 = por %p152, %p153
      %s156 = sadd.s32 %s155, 1
      %p159 = scmp.eq.s32.totalorder %s32, 1
      %p160 = scmp.ne.s32.totalorder %s155, %s157
      %p161 = scmp.eq.s32.totalorder %s32, 0
      %p162 = por %p160, %p161
      %p163 = scmp.ne.s32.totalorder %s155, %s157
      %p164 = scmp.eq.s32.totalorder %s37, 1
      %p165 = por %p163, %p164
      %p166 = scmp.ne.s32.totalorder %s157, %s158
      %p167 = scmp.eq.s32.totalorder %s37, 0
      %p168 = por %p166, %p167
      %p169 = scmp.ne.s32.totalorder %s157, %s158
      %p170 = scmp.eq.s32.totalorder %s38, 1
      %p171 = por %p169, %p170
      %p173 = scmp.ne.s32.totalorder %s158, %s172
      %p174 = scmp.eq.s32.totalorder %s38, 0
      %p175 = por %p173, %p174
      %s177 = sadd.s32 %s176, 1
      %p180 = scmp.eq.s32.totalorder %s32, 1
      %p181 = scmp.ne.s32.totalorder %s176, %s178
      %p182 = scmp.eq.s32.totalorder %s32, 0
      %p183 = por %p181, %p182
      %p184 = scmp.ne.s32.totalorder %s176, %s178
      %p185 = scmp.eq.s32.totalorder %s37, 1
      %p186 = por %p184, %p185
      %p187 = scmp.ne.s32.totalorder %s178, %s179
      %p188 = scmp.eq.s32.totalorder %s37, 0
      %p189 = por %p187, %p188
      %p190 = scmp.ne.s32.totalorder %s178, %s179
      %p191 = scmp.eq.s32.totalorder %s38, 1
      %p192 = por %p190, %p191
      %p194 = scmp.ne.s32.totalorder %s179, %s193
      %p195 = scmp.eq.s32.totalorder %s38, 0
      %p196 = por %p194, %p195
      %s198 = sadd.s32 %s197, 1
      %p201 = scmp.eq.s32.totalorder %s32, 1
      %p202 = scmp.ne.s32.totalorder %s197, %s199
      %p203 = scmp.eq.s32.totalorder %s32, 0
      %p204 = por %p202, %p203
      %p205 = scmp.ne.s32.totalorder %s197, %s199
      %p206 = scmp.eq.s32.totalorder %s37, 1
      %p207 = por %p205, %p206
      %p208 = scmp.ne.s32.totalorder %s199, %s200
      %p209 = scmp.eq.s32.totalorder %s37, 0
      %p210 = por %p208, %p209
      %p211 = scmp.ne.s32.totalorder %s199, %s200
      %p212 = scmp.eq.s32.totalorder %s38, 1
      %p213 = por %p211, %p212
      %p215 = scmp.ne.s32.totalorder %s200, %s214
      %p216 = scmp.eq.s32.totalorder %s38, 0
      %p217 = por %p215, %p216
      %s219 = sadd.s32 %s218, 1
      %p222 = scmp.eq.s32.totalorder %s32, 1
      %p223 = scmp.ne.s32.totalorder %s218, %s220
      %p224 = scmp.eq.s32.totalorder %s32, 0
      %p225 = por %p223, %p224
      %p226 = scmp.ne.s32.totalorder %s218, %s220
      %p227 = scmp.eq.s32.totalorder %s37, 1
      %p228 = por %p226, %p227
      %p229 = scmp.ne.s32.totalorder %s220, %s221
      %p230 = scmp.eq.s32.totalorder %s37, 0
      %p231 = por %p229, %p230
      %p232 = scmp.ne.s32.totalorder %s220, %s221
      %p233 = scmp.eq.s32.totalorder %s38, 1
      %p234 = por %p232, %p233
      %p236 = scmp.ne.s32.totalorder %s221, %s235
      %p237 = scmp.eq.s32.totalorder %s38, 0
      %p238 = por %p236, %p237
      %s240 = sadd.s32 %s239, 1
      %p243 = scmp.eq.s32.totalorder %s32, 1
      %p244 = scmp.ne.s32.totalorder %s239, %s241
      %p245 = scmp.eq.s32.totalorder %s32, 0
      %p246 = por %p244, %p245
      %p247 = scmp.ne.s32.totalorder %s239, %s241
      %p248 = scmp.eq.s32.totalorder %s37, 1
      %p249 = por %p247, %p248
      %p250 = scmp.ne.s32.totalorder %s241, %s242
      %p251 = scmp.eq.s32.totalorder %s37, 0
      %p252 = por %p250, %p251
      %p253 = scmp.ne.s32.totalorder %s241, %s242
      %p254 = scmp.eq.s32.totalorder %s38, 1
      %p255 = por %p253, %p254
      %p257 = scmp.ne.s32.totalorder %s242, %s256
      %p258 = scmp.eq.s32.totalorder %s38, 0
      %p259 = por %p257, %p258
      %s261 = sadd.s32 %s260, 1
      %p264 = scmp.eq.s32.totalorder %s32, 1
      %p265 = scmp.ne.s32.totalorder %s260, %s262
      %p266 = scmp.eq.s32.totalorder %s32, 0
      %p267 = por %p265, %p266
      %p268 = scmp.ne.s32.totalorder %s260, %s262
      %p269 = scmp.eq.s32.totalorder %s37, 1
      %p270 = por %p268, %p269
      %p271 = scmp.ne.s32.totalorder %s262, %s263
      %p272 = scmp.eq.s32.totalorder %s37, 0
      %p273 = por %p271, %p272
      %p274 = scmp.ne.s32.totalorder %s262, %s263
      %p275 = scmp.eq.s32.totalorder %s38, 1
      %p276 = por %p274, %p275
      %p278 = scmp.ne.s32.totalorder %s263, %s277
      %p279 = scmp.eq.s32.totalorder %s38, 0
      %p280 = por %p278, %p279
      %s282 = sadd.s32 %s281, 1
      %p285 = scmp.eq.s32.totalorder %s32, 1
      %p286 = scmp.ne.s32.totalorder %s281, %s283
      %p287 = scmp.eq.s32.totalorder %s32, 0
      %p288 = por %p286, %p287
      %p289 = scmp.ne.s32.totalorder %s281, %s283
      %p290 = scmp.eq.s32.totalorder %s37, 1
      %p291 = por %p289, %p290
      %p292 = scmp.ne.s32.totalorder %s283, %s284
      %p293 = scmp.eq.s32.totalorder %s37, 0
      %p294 = por %p292, %p293
      %p295 = scmp.ne.s32.totalorder %s283, %s284
      %p296 = scmp.eq.s32.totalorder %s38, 1
      %p297 = por %p295, %p296
      %p299 = scmp.ne.s32.totalorder %s284, %s298
      %p300 = scmp.eq.s32.totalorder %s38, 0
      %p301 = por %p299, %p300
      %s303 = sadd.s32 %s302, 1
      %p306 = scmp.eq.s32.totalorder %s32, 1
      %p307 = scmp.ne.s32.totalorder %s302, %s304
      %p308 = scmp.eq.s32.totalorder %s32, 0
      %p309 = por %p307, %p308
      %p310 = scmp.ne.s32.totalorder %s302, %s304
      %p311 = scmp.eq.s32.totalorder %s37, 1
      %p312 = por %p310, %p311
      %p313 = scmp.ne.s32.totalorder %s304, %s305
      %p314 = scmp.eq.s32.totalorder %s37, 0
      %p315 = por %p313, %p314
      %p316 = scmp.ne.s32.totalorder %s304, %s305
      %p317 = scmp.eq.s32.totalorder %s38, 1
      %p318 = por %p316, %p317
      %p320 = scmp.ne.s32.totalorder %s305, %s319
      %p321 = scmp.eq.s32.totalorder %s38, 0
      %p322 = por %p320, %p321
      %s324 = sadd.s32 %s323, 1
      %p327 = scmp.eq.s32.totalorder %s32, 1
      %p328 = scmp.ne.s32.totalorder %s323, %s325
      %p329 = scmp.eq.s32.totalorder %s32, 0
      %p330 = por %p328, %p329
      %p331 = scmp.ne.s32.totalorder %s323, %s325
      %p332 = scmp.eq.s32.totalorder %s37, 1
      %p333 = por %p331, %p332
      %p334 = scmp.ne.s32.totalorder %s325, %s326
      %p335 = scmp.eq.s32.totalorder %s37, 0
      %p336 = por %p334, %p335
      %p337 = scmp.ne.s32.totalorder %s325, %s326
      %p338 = scmp.eq.s32.totalorder %s38, 1
      %p339 = por %p337, %p338
      %p341 = scmp.ne.s32.totalorder %s326, %s340
      %p342 = scmp.eq.s32.totalorder %s38, 0
      %p343 = por %p341, %p342
      %s345 = sadd.s32 %s344, 1
      %p348 = scmp.eq.s32.totalorder %s32, 1
      %p349 = scmp.ne.s32.totalorder %s344, %s346
      %p350 = scmp.eq.s32.totalorder %s32, 0
      %p351 = por %p349, %p350
      %p352 = scmp.ne.s32.totalorder %s344, %s346
      %p353 = scmp.eq.s32.totalorder %s37, 1
      %p354 = por %p352, %p353
      %p355 = scmp.ne.s32.totalorder %s346, %s347
      %p356 = scmp.eq.s32.totalorder %s37, 0
      %p357 = por %p355, %p356
      %p358 = scmp.ne.s32.totalorder %s346, %s347
      %p359 = scmp.eq.s32.totalorder %s38, 1
      %p360 = por %p358, %p359
      %p362 = scmp.ne.s32.totalorder %s347, %s361
      %p363 = scmp.eq.s32.totalorder %s38, 0
      %p364 = por %p362, %p363
      %s366 = sadd.s32 %s365, 1
      %p369 = scmp.eq.s32.totalorder %s32, 1
      %p370 = scmp.ne.s32.totalorder %s365, %s367
      %p371 = scmp.eq.s32.totalorder %s32, 0
      %p372 = por %p370, %p371
      %p373 = scmp.ne.s32.totalorder %s365, %s367
      %p374 = scmp.eq.s32.totalorder %s37, 1
      %p375 = por %p373, %p374
      %p376 = scmp.ne.s32.totalorder %s367, %s368
      %p377 = scmp.eq.s32.totalorder %s37, 0
      %p378 = por %p376, %p377
      %p379 = scmp.ne.s32.totalorder %s367, %s368
      %p380 = scmp.eq.s32.totalorder %s38, 1
      %p381 = por %p379, %p380
      %p383 = scmp.ne.s32.totalorder %s368, %s382
      %p384 = scmp.eq.s32.totalorder %s38, 0
      %p385 = por %p383, %p384
      %s386 = ssub.s32 %s32, %s39
      %p387 = scmp.eq.s32.totalorder %s386, 0
      %s389 = sadd.s32 %s388, 1
      %s390 = scalar_select %p387, %s388, %s389
      %p393 = pneg %p387
      %p394 = scmp.eq.s32.totalorder %s32, 1
      %p395 = por %p393, %p394
      %p396 = scmp.ne.s32.totalorder %s388, %s391
      %p397 = scmp.eq.s32.totalorder %s32, 0
      %p398 = por %p396, %p397
      %p399 = scmp.ne.s32.totalorder %s388, %s391
      %p400 = scmp.eq.s32.totalorder %s37, 1
      %p401 = por %p399, %p400
      %p402 = scmp.ne.s32.totalorder %s391, %s392
      %p403 = scmp.eq.s32.totalorder %s37, 0
      %p404 = por %p402, %p403
      %p405 = scmp.ne.s32.totalorder %s391, %s392
      %p406 = scmp.eq.s32.totalorder %s38, 1
      %p407 = por %p405, %p406
      %p409 = scmp.ne.s32.totalorder %s392, %s408
      %p410 = scmp.eq.s32.totalorder %s38, 0
      %p411 = por %p409, %p410
      %p412 = scmp.le.s32.totalorder 1, %s32
      %p413 = scmp.lt.s32.totalorder %s32, 3
      %p414 = pnand %p412, %p413
      %p415 = pneg %p414
      // Predicated region
      $region9: #{tpu_custom_call.1} parent=5 // pred_check
        _
      $region10: #{tpu_custom_call.1} parent=5 // pred_check_branch
        %417 = sbr.rel (%p414) target = $region12
      $region11: #{tpu_custom_call.1} parent=5 // pred_region
        %s418 = ssub.s32 %s32, 1
        // Predicated region
        $region13: #{tpu_custom_call.1} parent=11 // pred_check
          %p419 = pneg %p105
        $region14: #{tpu_custom_call.1} parent=11 // pred_check_branch
          %421 = sbr.rel (%p419) target = $region16
        $region15: #{tpu_custom_call.1} parent=11 // pred_region
          _
        $region16: #{tpu_custom_call.1} parent=11 // pred_fallthru
          _
        // Predicated region
        $region17: #{tpu_custom_call.1} parent=11 // pred_check
          %p422 = pneg %p126
        $region18: #{tpu_custom_call.1} parent=11 // pred_check_branch
          %424 = sbr.rel (%p422) target = $region20
        $region19: #{tpu_custom_call.1} parent=11 // pred_region
          _
        $region20: #{tpu_custom_call.1} parent=11 // pred_fallthru
          _
        // Predicated region
        $region21: #{tpu_custom_call.1} parent=11 // pred_check
          %p425 = pneg %p147
        $region22: #{tpu_custom_call.1} parent=11 // pred_check_branch
          %427 = sbr.rel (%p425) target = $region24
        $region23: #{tpu_custom_call.1} parent=11 // pred_region
          _
        $region24: #{tpu_custom_call.1} parent=11 // pred_fallthru
          _
        // Predicated region
        $region25: #{tpu_custom_call.1} parent=11 // pred_check
          %p428 = pneg %p168
        $region26: #{tpu_custom_call.1} parent=11 // pred_check_branch
          %430 = sbr.rel (%p428) target = $region28
        $region27: #{tpu_custom_call.1} parent=11 // pred_region
          %432 = vsyncadd [#allocation6], 0
          %s433 = sshll.u32 %s5, 4
          %s434 = int_to_ptr.hbm [resolvable:$true] %s433
          %s435 = sshll.u32 [#allocation7], 4
          %s436 = int_to_ptr.vmem [resolvable:$true] %s435
          %441 = dma.hbm_to_vmem [thread:$0]  %s434, 32, %s436, [#allocation6], 16, 16, 1
        $region28: #{tpu_custom_call.1} parent=11 // pred_fallthru
          _
        // Predicated region
        $region29: #{tpu_custom_call.1} parent=11 // pred_check
          %p442 = pneg %p189
        $region30: #{tpu_custom_call.1} parent=11 // pred_check_branch
          %444 = sbr.rel (%p442) target = $region32
        $region31: #{tpu_custom_call.1} parent=11 // pred_region
          _
        $region32: #{tpu_custom_call.1} parent=11 // pred_fallthru
          _
        // Predicated region
        $region33: #{tpu_custom_call.1} parent=11 // pred_check
          %p445 = pneg %p210
        $region34: #{tpu_custom_call.1} parent=11 // pred_check_branch
          %447 = sbr.rel (%p445) target = $region36
        $region35: #{tpu_custom_call.1} parent=11 // pred_region
          _
        $region36: #{tpu_custom_call.1} parent=11 // pred_fallthru
          _
        // Predicated region
        $region37: #{tpu_custom_call.1} parent=11 // pred_check
          %p448 = pneg %p231
        $region38: #{tpu_custom_call.1} parent=11 // pred_check_branch
          %450 = sbr.rel (%p448) target = $region40
        $region39: #{tpu_custom_call.1} parent=11 // pred_region
          _
        $region40: #{tpu_custom_call.1} parent=11 // pred_fallthru
          _
        // Predicated region
        $region41: #{tpu_custom_call.1} parent=11 // pred_check
          %p451 = pneg %p252
        $region42: #{tpu_custom_call.1} parent=11 // pred_check_branch
          %453 = sbr.rel (%p451) target = $region44
        $region43: #{tpu_custom_call.1} parent=11 // pred_region
          _
        $region44: #{tpu_custom_call.1} parent=11 // pred_fallthru
          _
        // Predicated region
        $region45: #{tpu_custom_call.1} parent=11 // pred_check
          %p454 = pneg %p273
        $region46: #{tpu_custom_call.1} parent=11 // pred_check_branch
          %456 = sbr.rel (%p454) target = $region48
        $region47: #{tpu_custom_call.1} parent=11 // pred_region
          _
        $region48: #{tpu_custom_call.1} parent=11 // pred_fallthru
          _
        // Predicated region
        $region49: #{tpu_custom_call.1} parent=11 // pred_check
          %p457 = pneg %p294
        $region50: #{tpu_custom_call.1} parent=11 // pred_check_branch
          %459 = sbr.rel (%p457) target = $region52
        $region51: #{tpu_custom_call.1} parent=11 // pred_region
          %461 = vsyncadd [#allocation9], 0
          %s462 = sshll.u32 %s11, 4
          %s463 = int_to_ptr.hbm [resolvable:$true] %s462
          %s464 = sshll.u32 [#allocation8], 4
          %s465 = int_to_ptr.vmem [resolvable:$true] %s464
          %470 = dma.hbm_to_vmem [thread:$0]  %s463, 32, %s465, [#allocation9], 16, 16, 1
        $region52: #{tpu_custom_call.1} parent=11 // pred_fallthru
          _
        // Predicated region
        $region53: #{tpu_custom_call.1} parent=11 // pred_check
          %p471 = pneg %p315
        $region54: #{tpu_custom_call.1} parent=11 // pred_check_branch
          %473 = sbr.rel (%p471) target = $region56
        $region55: #{tpu_custom_call.1} parent=11 // pred_region
          _
        $region56: #{tpu_custom_call.1} parent=11 // pred_fallthru
          _
        // Predicated region
        $region57: #{tpu_custom_call.1} parent=11 // pred_check
          %p474 = pneg %p336
        $region58: #{tpu_custom_call.1} parent=11 // pred_check_branch
          %476 = sbr.rel (%p474) target = $region60
        $region59: #{tpu_custom_call.1} parent=11 // pred_region
          %478 = vsyncadd [#allocation9], 0
          %s479 = sshll.u32 %s13, 4
          %s480 = int_to_ptr.hbm [resolvable:$true] %s479
          %s481 = sshll.u32 [#allocation10], 4
          %s482 = int_to_ptr.vmem [resolvable:$true] %s481
          %487 = dma.hbm_to_vmem [thread:$0]  %s480, 32, %s482, [#allocation9], 16, 16, 1
        $region60: #{tpu_custom_call.1} parent=11 // pred_fallthru
          _
        // Predicated region
        $region61: #{tpu_custom_call.1} parent=11 // pred_check
          %p488 = pneg %p357
        $region62: #{tpu_custom_call.1} parent=11 // pred_check_branch
          %490 = sbr.rel (%p488) target = $region64
        $region63: #{tpu_custom_call.1} parent=11 // pred_region
          _
        $region64: #{tpu_custom_call.1} parent=11 // pred_fallthru
          _
        // Predicated region
        $region65: #{tpu_custom_call.1} parent=11 // pred_check
          %p491 = pneg %p378
        $region66: #{tpu_custom_call.1} parent=11 // pred_check_branch
          %493 = sbr.rel (%p491) target = $region68
        $region67: #{tpu_custom_call.1} parent=11 // pred_region
          _
        $region68: #{tpu_custom_call.1} parent=11 // pred_fallthru
          _
      $region12: #{tpu_custom_call.1} parent=5 // pred_fallthru
        _
      %p494 = scmp.lt.s32.totalorder %s32, 2
      // Predicated region
      $region69: #{tpu_custom_call.1} parent=5 // pred_check
        %p495 = pneg %p494
      $region70: #{tpu_custom_call.1} parent=5 // pred_check_branch
        %497 = sbr.rel (%p495) target = $region72
      $region71: #{tpu_custom_call.1} parent=5 // pred_region
        // Predicated region
        $region73: #{tpu_custom_call.1} parent=71 // pred_check
          %p498 = pneg %p52
        $region74: #{tpu_custom_call.1} parent=71 // pred_check_branch
          %500 = sbr.rel (%p498) target = $region76
        $region75: #{tpu_custom_call.1} parent=71 // pred_region
          %s501 = sand.u32 %s42, 1
          %s502 = scalar_lea.sflag [#allocation3], %s501
          %s503 = sand.u32 %s42, 1
          %s504 = smul.addr %s503, 8
          %s505 = scalar_lea.vmem [#allocation2], %s504
          %507 = vsyncadd %s502, 0
          %s508 = smul.addr %s32, 8
          %s509 = scalar_lea.hbm %s0, %s508
          %s511 = sshll.u32 %s509, 4
          %s512 = int_to_ptr.hbm [resolvable:$true] %s511
          %s513 = sshll.u32 %s505, 4
          %s514 = int_to_ptr.vmem [resolvable:$true] %s513
          %516 = dma.hbm_to_vmem [thread:$0]  %s512, 128, %s514, %s502
        $region76: #{tpu_custom_call.1} parent=71 // pred_fallthru
          _
        // Predicated region
        $region77: #{tpu_custom_call.1} parent=71 // pred_check
          %p517 = pneg %p78
        $region78: #{tpu_custom_call.1} parent=71 // pred_check_branch
          %519 = sbr.rel (%p517) target = $region80
        $region79: #{tpu_custom_call.1} parent=71 // pred_region
          %s520 = sand.u32 %s32, 1
          %s521 = scalar_lea.sflag [#allocation6], %s520
          %s522 = sand.u32 %s68, 1
          %s523 = scalar_lea.vmem [#allocation5], %s522
          %525 = vsyncadd %s521, 0
          %s526 = scalar_lea.hbm %s1, %s32
          %s528 = sshll.u32 %s526, 4
          %s529 = int_to_ptr.hbm [resolvable:$true] %s528
          %s530 = sshll.u32 %s523, 4
          %s531 = int_to_ptr.vmem [resolvable:$true] %s530
          %533 = dma.hbm_to_vmem [thread:$0]  %s529, 16, %s531, %s521
        $region80: #{tpu_custom_call.1} parent=71 // pred_fallthru
          _
      $region72: #{tpu_custom_call.1} parent=5 // pred_fallthru
        _
      %p534 = scmp.le.s32.totalorder 1, %s32
      %p535 = scmp.lt.s32.totalorder %s32, 3
      %p536 = pnand %p534, %p535
      %p537 = pneg %p536
      // Predicated region
      $region81: #{tpu_custom_call.1} parent=5 // pred_check
        _
      $region82: #{tpu_custom_call.1} parent=5 // pred_check_branch
        %539 = sbr.rel (%p536) target = $region84
      $region83: #{tpu_custom_call.1} parent=5 // pred_region
        %s540 = ssub.s32 %s32, 1
        %s541 = sand.u32 %s45, 1
        %s542 = scalar_lea.sflag [#allocation3], %s541
        %s543 = sand.u32 %s45, 1
        %s544 = smul.addr %s543, 8
        %s545 = scalar_lea.vmem [#allocation2], %s544
        // Predicated region
        $region85: #{tpu_custom_call.1} parent=83 // pred_check
          %p546 = pneg %p58
        $region86: #{tpu_custom_call.1} parent=83 // pred_check_branch
          %548 = sbr.rel (%p546) target = $region88
        $region87: #{tpu_custom_call.1} parent=83 // pred_region
          %550 = dma.done %s542, 128
        $region88: #{tpu_custom_call.1} parent=83 // pred_fallthru
          _
        %s551 = sand.u32 %s37, 1
        %s552 = scalar_lea.sflag [#allocation6], %s551
        %s553 = sand.u32 %s71, 1
        %s554 = scalar_lea.vmem [#allocation5], %s553
        // Predicated region
        $region89: #{tpu_custom_call.1} parent=83 // pred_check
          %p555 = pneg %p84
        $region90: #{tpu_custom_call.1} parent=83 // pred_check_branch
          %557 = sbr.rel (%p555) target = $region92
        $region91: #{tpu_custom_call.1} parent=83 // pred_region
          %559 = dma.done %s552, 16
        $region92: #{tpu_custom_call.1} parent=83 // pred_fallthru
          _
        // Predicated region
        $region93: #{tpu_custom_call.1} parent=83 // pred_check
          %p560 = pneg %p168
        $region94: #{tpu_custom_call.1} parent=83 // pred_check_branch
          %562 = sbr.rel (%p560) target = $region96
        $region95: #{tpu_custom_call.1} parent=83 // pred_region
          %564 = dma.done [#allocation6], 32
        $region96: #{tpu_custom_call.1} parent=83 // pred_fallthru
          _
        // Predicated region
        $region97: #{tpu_custom_call.1} parent=83 // pred_check
          %p565 = pneg %p294
        $region98: #{tpu_custom_call.1} parent=83 // pred_check_branch
          %567 = sbr.rel (%p565) target = $region100
        $region99: #{tpu_custom_call.1} parent=83 // pred_region
          %569 = dma.done [#allocation9], 32
        $region100: #{tpu_custom_call.1} parent=83 // pred_fallthru
          _
        // Predicated region
        $region101: #{tpu_custom_call.1} parent=83 // pred_check
          %p570 = pneg %p336
        $region102: #{tpu_custom_call.1} parent=83 // pred_check_branch
          %572 = sbr.rel (%p570) target = $region104
        $region103: #{tpu_custom_call.1} parent=83 // pred_region
          %574 = dma.done [#allocation9], 32
        $region104: #{tpu_custom_call.1} parent=83 // pred_fallthru
          _
        %s575 = sand.u32 %s45, 1
        %s576 = scalar_lea.sflag [#allocation3], %s575
        %s577 = sand.u32 %s45, 1
        %s578 = smul.addr %s577, 8
        %s579 = scalar_lea.vmem [#allocation2], %s578
        %p580 = pneg %p58
        %p581 = pneg %p55
        %s582 = sand.u32 %s37, 1
        %s583 = scalar_lea.sflag [#allocation6], %s582
        %s584 = sand.u32 %s71, 1
        %s585 = scalar_lea.vmem [#allocation5], %s584
        %p586 = pneg %p84
        %p587 = pneg %p81
        %p588 = pneg %p105
        %p589 = pneg %p102
        %p590 = pneg %p126
        %p591 = pneg %p123
        %p592 = pneg %p147
        %p593 = pneg %p144
        %p594 = pneg %p168
        %p595 = pneg %p165
        %p596 = pneg %p189
        %p597 = pneg %p186
        %p598 = pneg %p210
        %p599 = pneg %p207
        %p600 = pneg %p231
        %p601 = pneg %p228
        %p602 = pneg %p252
        %p603 = pneg %p249
        %p604 = pneg %p273
        %p605 = pneg %p270
        %p606 = pneg %p294
        %p607 = pneg %p291
        %p608 = pneg %p315
        %p609 = pneg %p312
        %p610 = pneg %p336
        %p611 = pneg %p333
        %p612 = pneg %p357
        %p613 = pneg %p354
        %p614 = pneg %p378
        %p615 = pneg %p375
        %p616 = pneg %p404
        %p617 = pneg %p401
        %s618 = sand.u32 %s391, 1
        %s619 = scalar_lea.sflag [#allocation4], %s618
        %s620 = sand.u32 %s391, 1
        %s621 = smul.addr %s620, 8
        %s622 = scalar_lea.vmem [#allocation11], %s621
        %v623 = vld [vmem:[%s554] sm:$0x1]
        %vm624 = vcmp.gt.f32.partialorder %v623, 0.0
        %v625 = vsel %vm624, 0.0, -1e+09
        %v626 = vld [vmem:[%s545] sm:$0xff]
        %v627 = vld [vmem:[%s2] sm:$0xff]
        %v628 = vld [vmem:[%s2 + $0x8] sm:$0xff]
        %v629 = vld [vmem:[%s2 + $0x10] sm:$0xff]
        %v630 = vld [vmem:[%s2 + $0x18] sm:$0xff]
        %v631 = vld [vmem:[%s3] sm:$0x1]
        %v633 = vperm.slane %v631, 0
        %vm635 = vcmask 261120
        %v637 = vsel %vm635, %v626, 0
        %639 = vmatpush.msra.mxu0 0.0
        %640 = vmatpush.msra.mxu0 0.0
        %641 = vmatpush.msra.mxu0 0.0
        %642 = vmatpush.msra.mxu0 0.0
        %643 = vmatpush.msra.mxu0 0.0
        %644 = vmatpush.msra.mxu0 0.0
        %645 = vmatpush.msra.mxu0 0.0
        %646 = vmatpush.msra.mxu0 0.0
        %647 = vmatpush.msra.mxu0 0.0
        %648 = vmatpush.msra.mxu0 0.0
        %649 = vmatpush.msra.mxu0 0.0
        %650 = vmatpush.msra.mxu0 0.0
        %651 = vmatpush.msra.mxu0 %v630
        %652 = vmatpush.msra.mxu0 %v629
        %653 = vmatpush.msra.mxu0 %v628
        %654 = vmatpush.msra.mxu0 %v627
        %655 = vmatmul.f32.gmra.mxu0 %v637
        %v656 = vpop.f32.mrf.mxu0
        %v657 = vadd.f32 %v633, %v656
        %658 = vdwg.mxu0
        %660 = vrot.lane.b32.xlu0 %v657, 120
        %v661 = vpop.permute.xlu0 %660
        %662 = vrot.lane.b32.xlu0 %v657, 112
        %v663 = vpop.permute.xlu0 %662
        %664 = vrot.lane.b32.xlu0 %v657, 104
        %v665 = vpop.permute.xlu0 %664
        %v667 = vperm.slane %v625, 0
        %669 = vrot.lane.b32.xlu0 %v657, 96
        %v670 = vpop.permute.xlu0 %669
        %vm671 = vcmask 64512
        %v672 = vsel %vm671, %v657, 0
        %v674 = vsel %vm671, %v670, 0
        %676 = vmatpush.xpose.msra.mxu0 0.0
        %677 = vmatpush.xpose.msra.mxu0 0.0
        %678 = vmatpush.xpose.msra.mxu0 0.0
        %679 = vmatpush.xpose.msra.mxu0 0.0
        %680 = vmatpush.xpose.msra.mxu0 0.0
        %681 = vmatpush.xpose.msra.mxu0 0.0
        %682 = vmatpush.xpose.msra.mxu0 0.0
        %683 = vmatpush.xpose.msra.mxu0 0.0
        %684 = vmatpush.xpose.msra.mxu0 0.0
        %685 = vmatpush.xpose.msra.mxu0 0.0
        %686 = vmatpush.xpose.msra.mxu0 0.0
        %687 = vmatpush.xpose.msra.mxu0 0.0
        %688 = vmatpush.xpose.msra.mxu0 0.0
        %689 = vmatpush.xpose.msra.mxu0 0.0
        %690 = vmatpush.xpose.msra.mxu0 0.0
        %691 = vmatpush.xpose.msra.mxu0 %v674
        %692 = vmatmul.f32.gmra.mxu0 %v672
        %v693 = vpop.f32.mrf.mxu0
        %v694 = vadd.f32 %v667, %v693
        %695 = vdwg.mxu0
        %696 = vrot.lane.b32.xlu0 %v661, 96
        %v697 = vpop.permute.xlu0 %696
        %v698 = vsel %vm671, %v661, 0
        %v700 = vsel %vm671, %v697, 0
        %702 = vmatpush.xpose.msra.mxu0 0.0
        %703 = vmatpush.xpose.msra.mxu0 0.0
        %704 = vmatpush.xpose.msra.mxu0 0.0
        %705 = vmatpush.xpose.msra.mxu0 0.0
        %706 = vmatpush.xpose.msra.mxu0 0.0
        %707 = vmatpush.xpose.msra.mxu0 0.0
        %708 = vmatpush.xpose.msra.mxu0 0.0
        %709 = vmatpush.xpose.msra.mxu0 0.0
        %710 = vmatpush.xpose.msra.mxu0 0.0
        %711 = vmatpush.xpose.msra.mxu0 0.0
        %712 = vmatpush.xpose.msra.mxu0 0.0
        %713 = vmatpush.xpose.msra.mxu0 0.0
        %714 = vmatpush.xpose.msra.mxu0 0.0
        %715 = vmatpush.xpose.msra.mxu0 0.0
        %716 = vmatpush.xpose.msra.mxu0 0.0
        %717 = vmatpush.xpose.msra.mxu0 %v700
        %718 = vmatmul.f32.gmra.mxu0 %v698
        %v719 = vpop.f32.mrf.mxu0
        %v720 = vadd.f32 %v667, %v719
        %721 = vdwg.mxu0
        %722 = vrot.lane.b32.xlu0 %v663, 96
        %v723 = vpop.permute.xlu0 %722
        %v724 = vsel %vm671, %v663, 0
        %v726 = vsel %vm671, %v723, 0
        %728 = vmatpush.xpose.msra.mxu0 0.0
        %729 = vmatpush.xpose.msra.mxu0 0.0
        %730 = vmatpush.xpose.msra.mxu0 0.0
        %731 = vmatpush.xpose.msra.mxu0 0.0
        %732 = vmatpush.xpose.msra.mxu0 0.0
        %733 = vmatpush.xpose.msra.mxu0 0.0
        %734 = vmatpush.xpose.msra.mxu0 0.0
        %735 = vmatpush.xpose.msra.mxu0 0.0
        %736 = vmatpush.xpose.msra.mxu0 0.0
        %737 = vmatpush.xpose.msra.mxu0 0.0
        %738 = vmatpush.xpose.msra.mxu0 0.0
        %739 = vmatpush.xpose.msra.mxu0 0.0
        %740 = vmatpush.xpose.msra.mxu0 0.0
        %741 = vmatpush.xpose.msra.mxu0 0.0
        %742 = vmatpush.xpose.msra.mxu0 0.0
        %743 = vmatpush.xpose.msra.mxu0 %v726
        %744 = vmatmul.f32.gmra.mxu0 %v724
        %v745 = vpop.f32.mrf.mxu0
        %v746 = vadd.f32 %v667, %v745
        %747 = vdwg.mxu0
        %748 = vrot.lane.b32.xlu0 %v665, 96
        %v749 = vpop.permute.xlu0 %748
        %v750 = vsel %vm671, %v665, 0
        %v752 = vsel %vm671, %v749, 0
        %754 = vmatpush.xpose.msra.mxu0 0.0
        %755 = vmatpush.xpose.msra.mxu0 0.0
        %756 = vmatpush.xpose.msra.mxu0 0.0
        %757 = vmatpush.xpose.msra.mxu0 0.0
        %758 = vmatpush.xpose.msra.mxu0 0.0
        %759 = vmatpush.xpose.msra.mxu0 0.0
        %760 = vmatpush.xpose.msra.mxu0 0.0
        %761 = vmatpush.xpose.msra.mxu0 0.0
        %762 = vmatpush.xpose.msra.mxu0 0.0
        %763 = vmatpush.xpose.msra.mxu0 0.0
        %764 = vmatpush.xpose.msra.mxu0 0.0
        %765 = vmatpush.xpose.msra.mxu0 0.0
        %766 = vmatpush.xpose.msra.mxu0 0.0
        %767 = vmatpush.xpose.msra.mxu0 0.0
        %768 = vmatpush.xpose.msra.mxu0 0.0
        %769 = vmatpush.xpose.msra.mxu0 %v752
        %770 = vmatmul.f32.gmra.mxu0 %v750
        %v771 = vpop.f32.mrf.mxu0
        %v772 = vadd.f32 %v667, %v771
        %773 = vdwg.mxu0
        %v774 = vsel %vm671, %v694, -inf
        %775 = vmax.xlane.f32.xlu0 %v774
        %v776 = vpop.xlane.xlu0 %775
        %v777 = vsel %vm671, %v720, -inf
        %778 = vmax.xlane.f32.xlu0 %v777
        %v779 = vpop.xlane.xlu0 %778
        %v780 = vsel %vm671, %v746, -inf
        %781 = vmax.xlane.f32.xlu0 %v780
        %v782 = vpop.xlane.xlu0 %781
        %v783 = vsel %vm671, %v772, -inf
        %784 = vmax.xlane.f32.xlu0 %v783
        %v785 = vpop.xlane.xlu0 %784
        %v786 = vsub.f32 %v694, %v776
        %v787 = vsub.f32 %v720, %v779
        %v788 = vsub.f32 %v746, %v782
        %v789 = vsub.f32 %v772, %v785
        %v790 = vmul.f32 %v786, 1.442695
        %v791 = vpow.pop %v790
        %v792 = vmul.f32 %v787, 1.442695
        %v793 = vpow.pop %v792
        %v794 = vmul.f32 %v788, 1.442695
        %v795 = vpow.pop %v794
        %v796 = vmul.f32 %v789, 1.442695
        %v797 = vpow.pop %v796
        %v798 = vsel %vm671, %v791, 0.0
        %799 = vadd.xlane.f32.xlu0 %v798
        %v800 = vpop.xlane.xlu0 %799
        %v801 = vsel %vm671, %v793, 0.0
        %802 = vadd.xlane.f32.xlu0 %v801
        %v803 = vpop.xlane.xlu0 %802
        %v804 = vsel %vm671, %v795, 0.0
        %805 = vadd.xlane.f32.xlu0 %v804
        %v806 = vpop.xlane.xlu0 %805
        %v807 = vsel %vm671, %v797, 0.0
        %808 = vadd.xlane.f32.xlu0 %v807
        %v809 = vpop.xlane.xlu0 %808
        %v810 = vrcp.pop %v800
        %v811 = vrcp.pop %v803
        %v812 = vrcp.pop %v806
        %v813 = vrcp.pop %v809
        %v814 = vmul.f32 %v791, %v810
        %v815 = vmul.f32 %v793, %v811
        %v816 = vmul.f32 %v795, %v812
        %v817 = vmul.f32 %v797, %v813
        %818 = vrot.lane.b32.xlu0 %v657, 64
        %v819 = vpop.permute.xlu0 %818
        %v822 = vsel %vm671, %v814, 0
        %824 = vmatpush.msra.mxu0 0.0
        %825 = vmatpush.msra.mxu0 0.0
        %826 = vmatpush.msra.mxu0 0.0
        %827 = vmatpush.msra.mxu0 0.0
        %828 = vmatpush.msra.mxu0 0.0
        %829 = vmatpush.msra.mxu0 0.0
        %830 = vmatpush.msra.mxu0 0.0
        %831 = vmatpush.msra.mxu0 0.0
        %832 = vmatpush.msra.mxu0 0.0
        %833 = vmatpush.msra.mxu0 0.0
        %834 = vmatpush.msra.mxu0 0.0
        %835 = vmatpush.msra.mxu0 0.0
        %836 = vmatpush.msra.mxu0 0.0
        %837 = vmatpush.msra.mxu0 0.0
        %838 = vmatpush.msra.mxu0 0.0
        %839 = vmatpush.msra.mxu0 %v819
        %840 = vmatmul.f32.gmra.mxu0 %v822
        %v841 = vpop.f32.mrf.mxu0
        %v842 = vadd.f32 0.0, %v841
        %843 = vdwg.mxu0
        %844 = vrot.lane.b32.xlu0 %v661, 64
        %v845 = vpop.permute.xlu0 %844
        %v848 = vsel %vm671, %v815, 0
        %850 = vmatpush.msra.mxu0 0.0
        %851 = vmatpush.msra.mxu0 0.0
        %852 = vmatpush.msra.mxu0 0.0
        %853 = vmatpush.msra.mxu0 0.0
        %854 = vmatpush.msra.mxu0 0.0
        %855 = vmatpush.msra.mxu0 0.0
        %856 = vmatpush.msra.mxu0 0.0
        %857 = vmatpush.msra.mxu0 0.0
        %858 = vmatpush.msra.mxu0 0.0
        %859 = vmatpush.msra.mxu0 0.0
        %860 = vmatpush.msra.mxu0 0.0
        %861 = vmatpush.msra.mxu0 0.0
        %862 = vmatpush.msra.mxu0 0.0
        %863 = vmatpush.msra.mxu0 0.0
        %864 = vmatpush.msra.mxu0 0.0
        %865 = vmatpush.msra.mxu0 %v845
        %866 = vmatmul.f32.gmra.mxu0 %v848
        %v867 = vpop.f32.mrf.mxu0
        %v868 = vadd.f32 0.0, %v867
        %869 = vdwg.mxu0
        %870 = vrot.lane.b32.xlu0 %v663, 64
        %v871 = vpop.permute.xlu0 %870
        %v874 = vsel %vm671, %v816, 0
        %876 = vmatpush.msra.mxu0 0.0
        %877 = vmatpush.msra.mxu0 0.0
        %878 = vmatpush.msra.mxu0 0.0
        %879 = vmatpush.msra.mxu0 0.0
        %880 = vmatpush.msra.mxu0 0.0
        %881 = vmatpush.msra.mxu0 0.0
        %882 = vmatpush.msra.mxu0 0.0
        %883 = vmatpush.msra.mxu0 0.0
        %884 = vmatpush.msra.mxu0 0.0
        %885 = vmatpush.msra.mxu0 0.0
        %886 = vmatpush.msra.mxu0 0.0
        %887 = vmatpush.msra.mxu0 0.0
        %888 = vmatpush.msra.mxu0 0.0
        %889 = vmatpush.msra.mxu0 0.0
        %890 = vmatpush.msra.mxu0 0.0
        %891 = vmatpush.msra.mxu0 %v871
        %892 = vmatmul.f32.gmra.mxu0 %v874
        %v893 = vpop.f32.mrf.mxu0
        %v894 = vadd.f32 0.0, %v893
        %895 = vdwg.mxu0
        %896 = vrot.lane.b32.xlu0 %v665, 64
        %v897 = vpop.permute.xlu0 %896
        %v900 = vsel %vm671, %v817, 0
        %902 = vmatpush.msra.mxu0 0.0
        %903 = vmatpush.msra.mxu0 0.0
        %904 = vmatpush.msra.mxu0 0.0
        %905 = vmatpush.msra.mxu0 0.0
        %906 = vmatpush.msra.mxu0 0.0
        %907 = vmatpush.msra.mxu0 0.0
        %908 = vmatpush.msra.mxu0 0.0
        %909 = vmatpush.msra.mxu0 0.0
        %910 = vmatpush.msra.mxu0 0.0
        %911 = vmatpush.msra.mxu0 0.0
        %912 = vmatpush.msra.mxu0 0.0
        %913 = vmatpush.msra.mxu0 0.0
        %914 = vmatpush.msra.mxu0 0.0
        %915 = vmatpush.msra.mxu0 0.0
        %916 = vmatpush.msra.mxu0 0.0
        %917 = vmatpush.msra.mxu0 %v897
        %918 = vmatmul.f32.gmra.mxu0 %v900
        %v919 = vpop.f32.mrf.mxu0
        %v920 = vadd.f32 0.0, %v919
        %921 = vdwg.mxu0
        %923 = vrot.lane.b32.xlu0 %v868, 8
        %v924 = vpop.permute.xlu0 %923
        %927 = vrot.lane.b32.xlu0 %v894, 16
        %v928 = vpop.permute.xlu0 %927
        %931 = vrot.lane.b32.xlu0 %v920, 24
        %v932 = vpop.permute.xlu0 %931
        %v934 = vsel %vm671, %v842, %v924
        %vm935 = vcmask 130048
        %v936 = vsel %vm935, %v934, %v928
        %vm937 = vcmask 195584
        %v938 = vsel %vm937, %v936, %v932
        %v939 = vld [vmem:[%s4] sm:$0xff]
        %v940 = vld [vmem:[%s4 + $0x8] sm:$0xff]
        %v941 = vld [vmem:[%s4 + $0x10] sm:$0xff]
        %v942 = vld [vmem:[%s4 + $0x18] sm:$0xff]
        %v943 = vld [vmem:[#allocation7] sm:$0x1]
        %v945 = vperm.slane %v943, 0
        %v948 = vsel %vm635, %v938, 0
        %950 = vmatpush.msra.mxu0 0.0
        %951 = vmatpush.msra.mxu0 0.0
        %952 = vmatpush.msra.mxu0 0.0
        %953 = vmatpush.msra.mxu0 0.0
        %954 = vmatpush.msra.mxu0 0.0
        %955 = vmatpush.msra.mxu0 0.0
        %956 = vmatpush.msra.mxu0 0.0
        %957 = vmatpush.msra.mxu0 0.0
        %958 = vmatpush.msra.mxu0 0.0
        %959 = vmatpush.msra.mxu0 0.0
        %960 = vmatpush.msra.mxu0 0.0
        %961 = vmatpush.msra.mxu0 0.0
        %962 = vmatpush.msra.mxu0 %v942
        %963 = vmatpush.msra.mxu0 %v941
        %964 = vmatpush.msra.mxu0 %v940
        %965 = vmatpush.msra.mxu0 %v939
        %966 = vmatmul.f32.gmra.mxu0 %v948
        %v967 = vpop.f32.mrf.mxu0
        %v968 = vadd.f32 %v945, %v967
        %969 = vdwg.mxu0
        %v970 = vadd.f32 %v626, %v968
        %v971 = vld [vmem:[%s10] sm:$0x1]
        %v972 = vld [vmem:[#allocation8] sm:$0x1]
        %v973 = vsel %vm635, %v970, 0.0
        %974 = vadd.xlane.f32.xlu0 %v973
        %v975 = vpop.xlane.xlu0 %974
        %v976 = vrcp.pop 32.0
        %v977 = vmul.f32 32.0, %v976
        %v978 = vsub.f32 1.0, %v977
        %v979 = vmul.f32 %v976, %v978
        %v980 = vadd.f32 %v976, %v979
        %vm981 = vweird.f32 %v976
        %v982 = vsel %vm981, %v976, %v980
        %v983 = vmul.f32 %v975, %v982
        %v984 = vsub.f32 %v970, %v983
        %v985 = vmul.f32 %v984, %v984
        %v986 = vsel %vm635, %v985, 0.0
        %987 = vadd.xlane.f32.xlu0 %v986
        %v988 = vpop.xlane.xlu0 %987
        %v989 = vmul.f32 %v988, %v982
        %v990 = vadd.f32 %v989, 1e-05
        %v991 = vrsqrt.pop %v990
        %v992 = vmul.f32 %v991, %v990
        %v993 = vmul.f32 %v992, %v991
        %v994 = vmul.f32 0.5, %v993
        %v995 = vsub.f32 1.5, %v994
        %v996 = vmul.f32 %v991, %v995
        %vm997 = vweird.f32 %v990
        %vm998 = vweird.f32 %v991
        %vm999 = vmor %vm997, %vm998
        %v1000 = vsel %vm999, %v991, %v996
        %v1001 = vmul.f32 %v984, %v1000
        %v1003 = vperm.slane %v971, 0
        %v1005 = vmul.f32 %v1001, %v1003
        %v1007 = vperm.slane %v972, 0
        %v1009 = vadd.f32 %v1005, %v1007
        %v1010 = vld [vmem:[%s6] sm:$0xff]
        %v1011 = vld [vmem:[%s6 + $0x8] sm:$0xff]
        %v1012 = vld [vmem:[%s6 + $0x10] sm:$0xff]
        %v1013 = vld [vmem:[%s6 + $0x18] sm:$0xff]
        %v1014 = vld [vmem:[%s7] sm:$0x1]
        %v1016 = vperm.slane %v1014, 0
        %v1019 = vsel %vm635, %v1009, 0
        %1021 = vmatpush.msra.mxu0 0.0
        %1022 = vmatpush.msra.mxu0 0.0
        %1023 = vmatpush.msra.mxu0 0.0
        %1024 = vmatpush.msra.mxu0 0.0
        %1025 = vmatpush.msra.mxu0 0.0
        %1026 = vmatpush.msra.mxu0 0.0
        %1027 = vmatpush.msra.mxu0 0.0
        %1028 = vmatpush.msra.mxu0 0.0
        %1029 = vmatpush.msra.mxu0 0.0
        %1030 = vmatpush.msra.mxu0 0.0
        %1031 = vmatpush.msra.mxu0 0.0
        %1032 = vmatpush.msra.mxu0 0.0
        %1033 = vmatpush.msra.mxu0 %v1013
        %1034 = vmatpush.msra.mxu0 %v1012
        %1035 = vmatpush.msra.mxu0 %v1011
        %1036 = vmatpush.msra.mxu0 %v1010
        %1037 = vmatmul.f32.gmra.mxu0 %v1019
        %v1038 = vpop.f32.mrf.mxu0
        %v1039 = vadd.f32 %v1016, %v1038
        %1040 = vdwg.mxu0
        %v1041 = vmax.f32 %v1039, 0.0
        %v1042 = vld [vmem:[%s8] sm:$0xff]
        %v1043 = vld [vmem:[%s8 + $0x8] sm:$0xff]
        %v1044 = vld [vmem:[%s8 + $0x10] sm:$0xff]
        %v1045 = vld [vmem:[%s8 + $0x18] sm:$0xff]
        %v1046 = vld [vmem:[%s8 + $0x20] sm:$0xff]
        %v1047 = vld [vmem:[%s8 + $0x28] sm:$0xff]
        %v1048 = vld [vmem:[%s8 + $0x30] sm:$0xff]
        %v1049 = vld [vmem:[%s8 + $0x38] sm:$0xff]
        %v1050 = vld [vmem:[%s9] sm:$0x1]
        %v1052 = vperm.slane %v1050, 0
        %vm1054 = vcmask 523264
        %v1056 = vsel %vm1054, %v1041, 0
        %1058 = vmatpush.msra.mxu0 0.0
        %1059 = vmatpush.msra.mxu0 0.0
        %1060 = vmatpush.msra.mxu0 0.0
        %1061 = vmatpush.msra.mxu0 0.0
        %1062 = vmatpush.msra.mxu0 0.0
        %1063 = vmatpush.msra.mxu0 0.0
        %1064 = vmatpush.msra.mxu0 0.0
        %1065 = vmatpush.msra.mxu0 0.0
        %1066 = vmatpush.msra.mxu0 %v1049
        %1067 = vmatpush.msra.mxu0 %v1048
        %1068 = vmatpush.msra.mxu0 %v1047
        %1069 = vmatpush.msra.mxu0 %v1046
        %1070 = vmatpush.msra.mxu0 %v1045
        %1071 = vmatpush.msra.mxu0 %v1044
        %1072 = vmatpush.msra.mxu0 %v1043
        %1073 = vmatpush.msra.mxu0 %v1042
        %1074 = vmatmul.f32.gmra.mxu0 %v1056
        %v1075 = vpop.f32.mrf.mxu0
        %v1076 = vadd.f32 %v1052, %v1075
        %1077 = vdwg.mxu0
        %v1078 = vadd.f32 %v1009, %v1076
        %v1079 = vld [vmem:[%s12] sm:$0x1]
        %v1080 = vld [vmem:[#allocation10] sm:$0x1]
        %v1081 = vsel %vm635, %v1078, 0.0
        %1082 = vadd.xlane.f32.xlu0 %v1081
        %v1083 = vpop.xlane.xlu0 %1082
        %v1084 = vmul.f32 %v1083, %v982
        %v1085 = vsub.f32 %v1078, %v1084
        %v1086 = vmul.f32 %v1085, %v1085
        %v1087 = vsel %vm635, %v1086, 0.0
        %1088 = vadd.xlane.f32.xlu0 %v1087
        %v1089 = vpop.xlane.xlu0 %1088
        %v1090 = vmul.f32 %v1089, %v982
        %v1091 = vadd.f32 %v1090, 1e-05
        %v1092 = vrsqrt.pop %v1091
        %v1093 = vmul.f32 %v1092, %v1091
        %v1094 = vmul.f32 %v1093, %v1092
        %v1095 = vmul.f32 0.5, %v1094
        %v1096 = vsub.f32 1.5, %v1095
        %v1097 = vmul.f32 %v1092, %v1096
        %vm1098 = vweird.f32 %v1091
        %vm1099 = vweird.f32 %v1092
        %vm1100 = vmor %vm1098, %vm1099
        %v1101 = vsel %vm1100, %v1092, %v1097
        %v1102 = vmul.f32 %v1085, %v1101
        %v1104 = vperm.slane %v1079, 0
        %v1106 = vmul.f32 %v1102, %v1104
        %v1108 = vperm.slane %v1080, 0
        %v1110 = vadd.f32 %v1106, %v1108
        %s1111 = scalar_lea.vmem %s2, 32
        %v1112 = vld [vmem:[%s1111] sm:$0xff]
        %v1113 = vld [vmem:[%s1111 + $0x8] sm:$0xff]
        %v1114 = vld [vmem:[%s1111 + $0x10] sm:$0xff]
        %v1115 = vld [vmem:[%s1111 + $0x18] sm:$0xff]
        %s1116 = scalar_lea.vmem %s3, 1
        %v1117 = vld [vmem:[%s1116] sm:$0x1]
        %v1119 = vperm.slane %v1117, 0
        %v1122 = vsel %vm635, %v1110, 0
        %1124 = vmatpush.msra.mxu0 0.0
        %1125 = vmatpush.msra.mxu0 0.0
        %1126 = vmatpush.msra.mxu0 0.0
        %1127 = vmatpush.msra.mxu0 0.0
        %1128 = vmatpush.msra.mxu0 0.0
        %1129 = vmatpush.msra.mxu0 0.0
        %1130 = vmatpush.msra.mxu0 0.0
        %1131 = vmatpush.msra.mxu0 0.0
        %1132 = vmatpush.msra.mxu0 0.0
        %1133 = vmatpush.msra.mxu0 0.0
        %1134 = vmatpush.msra.mxu0 0.0
        %1135 = vmatpush.msra.mxu0 0.0
        %1136 = vmatpush.msra.mxu0 %v1115
        %1137 = vmatpush.msra.mxu0 %v1114
        %1138 = vmatpush.msra.mxu0 %v1113
        %1139 = vmatpush.msra.mxu0 %v1112
        %1140 = vmatmul.f32.gmra.mxu0 %v1122
        %v1141 = vpop.f32.mrf.mxu0
        %v1142 = vadd.f32 %v1119, %v1141
        %1143 = vdwg.mxu0
        %1145 = vrot.lane.b32.xlu0 %v1142, 120
        %v1146 = vpop.permute.xlu0 %1145
        %1147 = vrot.lane.b32.xlu0 %v1142, 112
        %v1148 = vpop.permute.xlu0 %1147
        %1149 = vrot.lane.b32.xlu0 %v1142, 104
        %v1150 = vpop.permute.xlu0 %1149
        %1151 = vrot.lane.b32.xlu0 %v1142, 96
        %v1152 = vpop.permute.xlu0 %1151
        %v1153 = vsel %vm671, %v1142, 0
        %v1155 = vsel %vm671, %v1152, 0
        %1157 = vmatpush.xpose.msra.mxu0 0.0
        %1158 = vmatpush.xpose.msra.mxu0 0.0
        %1159 = vmatpush.xpose.msra.mxu0 0.0
        %1160 = vmatpush.xpose.msra.mxu0 0.0
        %1161 = vmatpush.xpose.msra.mxu0 0.0
        %1162 = vmatpush.xpose.msra.mxu0 0.0
        %1163 = vmatpush.xpose.msra.mxu0 0.0
        %1164 = vmatpush.xpose.msra.mxu0 0.0
        %1165 = vmatpush.xpose.msra.mxu0 0.0
        %1166 = vmatpush.xpose.msra.mxu0 0.0
        %1167 = vmatpush.xpose.msra.mxu0 0.0
        %1168 = vmatpush.xpose.msra.mxu0 0.0
        %1169 = vmatpush.xpose.msra.mxu0 0.0
        %1170 = vmatpush.xpose.msra.mxu0 0.0
        %1171 = vmatpush.xpose.msra.mxu0 0.0
        %1172 = vmatpush.xpose.msra.mxu0 %v1155
        %1173 = vmatmul.f32.gmra.mxu0 %v1153
        %v1174 = vpop.f32.mrf.mxu0
        %v1175 = vadd.f32 %v667, %v1174
        %1176 = vdwg.mxu0
        %1177 = vrot.lane.b32.xlu0 %v1146, 96
        %v1178 = vpop.permute.xlu0 %1177
        %v1179 = vsel %vm671, %v1146, 0
        %v1181 = vsel %vm671, %v1178, 0
        %1183 = vmatpush.xpose.msra.mxu0 0.0
        %1184 = vmatpush.xpose.msra.mxu0 0.0
        %1185 = vmatpush.xpose.msra.mxu0 0.0
        %1186 = vmatpush.xpose.msra.mxu0 0.0
        %1187 = vmatpush.xpose.msra.mxu0 0.0
        %1188 = vmatpush.xpose.msra.mxu0 0.0
        %1189 = vmatpush.xpose.msra.mxu0 0.0
        %1190 = vmatpush.xpose.msra.mxu0 0.0
        %1191 = vmatpush.xpose.msra.mxu0 0.0
        %1192 = vmatpush.xpose.msra.mxu0 0.0
        %1193 = vmatpush.xpose.msra.mxu0 0.0
        %1194 = vmatpush.xpose.msra.mxu0 0.0
        %1195 = vmatpush.xpose.msra.mxu0 0.0
        %1196 = vmatpush.xpose.msra.mxu0 0.0
        %1197 = vmatpush.xpose.msra.mxu0 0.0
        %1198 = vmatpush.xpose.msra.mxu0 %v1181
        %1199 = vmatmul.f32.gmra.mxu0 %v1179
        %v1200 = vpop.f32.mrf.mxu0
        %v1201 = vadd.f32 %v667, %v1200
        %1202 = vdwg.mxu0
        %1203 = vrot.lane.b32.xlu0 %v1148, 96
        %v1204 = vpop.permute.xlu0 %1203
        %v1205 = vsel %vm671, %v1148, 0
        %v1207 = vsel %vm671, %v1204, 0
        %1209 = vmatpush.xpose.msra.mxu0 0.0
        %1210 = vmatpush.xpose.msra.mxu0 0.0
        %1211 = vmatpush.xpose.msra.mxu0 0.0
        %1212 = vmatpush.xpose.msra.mxu0 0.0
        %1213 = vmatpush.xpose.msra.mxu0 0.0
        %1214 = vmatpush.xpose.msra.mxu0 0.0
        %1215 = vmatpush.xpose.msra.mxu0 0.0
        %1216 = vmatpush.xpose.msra.mxu0 0.0
        %1217 = vmatpush.xpose.msra.mxu0 0.0
        %1218 = vmatpush.xpose.msra.mxu0 0.0
        %1219 = vmatpush.xpose.msra.mxu0 0.0
        %1220 = vmatpush.xpose.msra.mxu0 0.0
        %1221 = vmatpush.xpose.msra.mxu0 0.0
        %1222 = vmatpush.xpose.msra.mxu0 0.0
        %1223 = vmatpush.xpose.msra.mxu0 0.0
        %1224 = vmatpush.xpose.msra.mxu0 %v1207
        %1225 = vmatmul.f32.gmra.mxu0 %v1205
        %v1226 = vpop.f32.mrf.mxu0
        %v1227 = vadd.f32 %v667, %v1226
        %1228 = vdwg.mxu0
        %1229 = vrot.lane.b32.xlu0 %v1150, 96
        %v1230 = vpop.permute.xlu0 %1229
        %v1231 = vsel %vm671, %v1150, 0
        %v1233 = vsel %vm671, %v1230, 0
        %1235 = vmatpush.xpose.msra.mxu0 0.0
        %1236 = vmatpush.xpose.msra.mxu0 0.0
        %1237 = vmatpush.xpose.msra.mxu0 0.0
        %1238 = vmatpush.xpose.msra.mxu0 0.0
        %1239 = vmatpush.xpose.msra.mxu0 0.0
        %1240 = vmatpush.xpose.msra.mxu0 0.0
        %1241 = vmatpush.xpose.msra.mxu0 0.0
        %1242 = vmatpush.xpose.msra.mxu0 0.0
        %1243 = vmatpush.xpose.msra.mxu0 0.0
        %1244 = vmatpush.xpose.msra.mxu0 0.0
        %1245 = vmatpush.xpose.msra.mxu0 0.0
        %1246 = vmatpush.xpose.msra.mxu0 0.0
        %1247 = vmatpush.xpose.msra.mxu0 0.0
        %1248 = vmatpush.xpose.msra.mxu0 0.0
        %1249 = vmatpush.xpose.msra.mxu0 0.0
        %1250 = vmatpush.xpose.msra.mxu0 %v1233
        %1251 = vmatmul.f32.gmra.mxu0 %v1231
        %v1252 = vpop.f32.mrf.mxu0
        %v1253 = vadd.f32 %v667, %v1252
        %1254 = vdwg.mxu0
        %v1255 = vsel %vm671, %v1175, -inf
        %1256 = vmax.xlane.f32.xlu0 %v1255
        %v1257 = vpop.xlane.xlu0 %1256
        %v1258 = vsel %vm671, %v1201, -inf
        %1259 = vmax.xlane.f32.xlu0 %v1258
        %v1260 = vpop.xlane.xlu0 %1259
        %v1261 = vsel %vm671, %v1227, -inf
        %1262 = vmax.xlane.f32.xlu0 %v1261
        %v1263 = vpop.xlane.xlu0 %1262
        %v1264 = vsel %vm671, %v1253, -inf
        %1265 = vmax.xlane.f32.xlu0 %v1264
        %v1266 = vpop.xlane.xlu0 %1265
        %v1267 = vsub.f32 %v1175, %v1257
        %v1268 = vsub.f32 %v1201, %v1260
        %v1269 = vsub.f32 %v1227, %v1263
        %v1270 = vsub.f32 %v1253, %v1266
        %v1271 = vmul.f32 %v1267, 1.442695
        %v1272 = vpow.pop %v1271
        %v1273 = vmul.f32 %v1268, 1.442695
        %v1274 = vpow.pop %v1273
        %v1275 = vmul.f32 %v1269, 1.442695
        %v1276 = vpow.pop %v1275
        %v1277 = vmul.f32 %v1270, 1.442695
        %v1278 = vpow.pop %v1277
        %v1279 = vsel %vm671, %v1272, 0.0
        %1280 = vadd.xlane.f32.xlu0 %v1279
        %v1281 = vpop.xlane.xlu0 %1280
        %v1282 = vsel %vm671, %v1274, 0.0
        %1283 = vadd.xlane.f32.xlu0 %v1282
        %v1284 = vpop.xlane.xlu0 %1283
        %v1285 = vsel %vm671, %v1276, 0.0
        %1286 = vadd.xlane.f32.xlu0 %v1285
        %v1287 = vpop.xlane.xlu0 %1286
        %v1288 = vsel %vm671, %v1278, 0.0
        %1289 = vadd.xlane.f32.xlu0 %v1288
        %v1290 = vpop.xlane.xlu0 %1289
        %v1291 = vrcp.pop %v1281
        %v1292 = vrcp.pop %v1284
        %v1293 = vrcp.pop %v1287
        %v1294 = vrcp.pop %v1290
        %v1295 = vmul.f32 %v1272, %v1291
        %v1296 = vmul.f32 %v1274, %v1292
        %v1297 = vmul.f32 %v1276, %v1293
        %v1298 = vmul.f32 %v1278, %v1294
        %1299 = vrot.lane.b32.xlu0 %v1142, 64
        %v1300 = vpop.permute.xlu0 %1299
        %v1303 = vsel %vm671, %v1295, 0
        %1305 = vmatpush.msra.mxu0 0.0
        %1306 = vmatpush.msra.mxu0 0.0
        %1307 = vmatpush.msra.mxu0 0.0
        %1308 = vmatpush.msra.mxu0 0.0
        %1309 = vmatpush.msra.mxu0 0.0
        %1310 = vmatpush.msra.mxu0 0.0
        %1311 = vmatpush.msra.mxu0 0.0
        %1312 = vmatpush.msra.mxu0 0.0
        %1313 = vmatpush.msra.mxu0 0.0
        %1314 = vmatpush.msra.mxu0 0.0
        %1315 = vmatpush.msra.mxu0 0.0
        %1316 = vmatpush.msra.mxu0 0.0
        %1317 = vmatpush.msra.mxu0 0.0
        %1318 = vmatpush.msra.mxu0 0.0
        %1319 = vmatpush.msra.mxu0 0.0
        %1320 = vmatpush.msra.mxu0 %v1300
        %1321 = vmatmul.f32.gmra.mxu0 %v1303
        %v1322 = vpop.f32.mrf.mxu0
        %v1323 = vadd.f32 0.0, %v1322
        %1324 = vdwg.mxu0
        %1325 = vrot.lane.b32.xlu0 %v1146, 64
        %v1326 = vpop.permute.xlu0 %1325
        %v1329 = vsel %vm671, %v1296, 0
        %1331 = vmatpush.msra.mxu0 0.0
        %1332 = vmatpush.msra.mxu0 0.0
        %1333 = vmatpush.msra.mxu0 0.0
        %1334 = vmatpush.msra.mxu0 0.0
        %1335 = vmatpush.msra.mxu0 0.0
        %1336 = vmatpush.msra.mxu0 0.0
        %1337 = vmatpush.msra.mxu0 0.0
        %1338 = vmatpush.msra.mxu0 0.0
        %1339 = vmatpush.msra.mxu0 0.0
        %1340 = vmatpush.msra.mxu0 0.0
        %1341 = vmatpush.msra.mxu0 0.0
        %1342 = vmatpush.msra.mxu0 0.0
        %1343 = vmatpush.msra.mxu0 0.0
        %1344 = vmatpush.msra.mxu0 0.0
        %1345 = vmatpush.msra.mxu0 0.0
        %1346 = vmatpush.msra.mxu0 %v1326
        %1347 = vmatmul.f32.gmra.mxu0 %v1329
        %v1348 = vpop.f32.mrf.mxu0
        %v1349 = vadd.f32 0.0, %v1348
        %1350 = vdwg.mxu0
        %1351 = vrot.lane.b32.xlu0 %v1148, 64
        %v1352 = vpop.permute.xlu0 %1351
        %v1355 = vsel %vm671, %v1297, 0
        %1357 = vmatpush.msra.mxu0 0.0
        %1358 = vmatpush.msra.mxu0 0.0
        %1359 = vmatpush.msra.mxu0 0.0
        %1360 = vmatpush.msra.mxu0 0.0
        %1361 = vmatpush.msra.mxu0 0.0
        %1362 = vmatpush.msra.mxu0 0.0
        %1363 = vmatpush.msra.mxu0 0.0
        %1364 = vmatpush.msra.mxu0 0.0
        %1365 = vmatpush.msra.mxu0 0.0
        %1366 = vmatpush.msra.mxu0 0.0
        %1367 = vmatpush.msra.mxu0 0.0
        %1368 = vmatpush.msra.mxu0 0.0
        %1369 = vmatpush.msra.mxu0 0.0
        %1370 = vmatpush.msra.mxu0 0.0
        %1371 = vmatpush.msra.mxu0 0.0
        %1372 = vmatpush.msra.mxu0 %v1352
        %1373 = vmatmul.f32.gmra.mxu0 %v1355
        %v1374 = vpop.f32.mrf.mxu0
        %v1375 = vadd.f32 0.0, %v1374
        %1376 = vdwg.mxu0
        %1377 = vrot.lane.b32.xlu0 %v1150, 64
        %v1378 = vpop.permute.xlu0 %1377
        %v1381 = vsel %vm671, %v1298, 0
        %1383 = vmatpush.msra.mxu0 0.0
        %1384 = vmatpush.msra.mxu0 0.0
        %1385 = vmatpush.msra.mxu0 0.0
        %1386 = vmatpush.msra.mxu0 0.0
        %1387 = vmatpush.msra.mxu0 0.0
        %1388 = vmatpush.msra.mxu0 0.0
        %1389 = vmatpush.msra.mxu0 0.0
        %1390 = vmatpush.msra.mxu0 0.0
        %1391 = vmatpush.msra.mxu0 0.0
        %1392 = vmatpush.msra.mxu0 0.0
        %1393 = vmatpush.msra.mxu0 0.0
        %1394 = vmatpush.msra.mxu0 0.0
        %1395 = vmatpush.msra.mxu0 0.0
        %1396 = vmatpush.msra.mxu0 0.0
        %1397 = vmatpush.msra.mxu0 0.0
        %1398 = vmatpush.msra.mxu0 %v1378
        %1399 = vmatmul.f32.gmra.mxu0 %v1381
        %v1400 = vpop.f32.mrf.mxu0
        %v1401 = vadd.f32 0.0, %v1400
        %1402 = vdwg.mxu0
        %1404 = vrot.lane.b32.xlu0 %v1349, 8
        %v1405 = vpop.permute.xlu0 %1404
        %1408 = vrot.lane.b32.xlu0 %v1375, 16
        %v1409 = vpop.permute.xlu0 %1408
        %1412 = vrot.lane.b32.xlu0 %v1401, 24
        %v1413 = vpop.permute.xlu0 %1412
        %v1415 = vsel %vm671, %v1323, %v1405
        %v1416 = vsel %vm935, %v1415, %v1409
        %v1417 = vsel %vm937, %v1416, %v1413
        %s1418 = scalar_lea.vmem %s4, 32
        %v1419 = vld [vmem:[%s1418] sm:$0xff]
        %v1420 = vld [vmem:[%s1418 + $0x8] sm:$0xff]
        %v1421 = vld [vmem:[%s1418 + $0x10] sm:$0xff]
        %v1422 = vld [vmem:[%s1418 + $0x18] sm:$0xff]
        %s1423 = scalar_lea.vmem [#allocation7], 1
        %v1424 = vld [vmem:[%s1423] sm:$0x1]
        %v1426 = vperm.slane %v1424, 0
        %v1429 = vsel %vm635, %v1417, 0
        %1431 = vmatpush.msra.mxu0 0.0
        %1432 = vmatpush.msra.mxu0 0.0
        %1433 = vmatpush.msra.mxu0 0.0
        %1434 = vmatpush.msra.mxu0 0.0
        %1435 = vmatpush.msra.mxu0 0.0
        %1436 = vmatpush.msra.mxu0 0.0
        %1437 = vmatpush.msra.mxu0 0.0
        %1438 = vmatpush.msra.mxu0 0.0
        %1439 = vmatpush.msra.mxu0 0.0
        %1440 = vmatpush.msra.mxu0 0.0
        %1441 = vmatpush.msra.mxu0 0.0
        %1442 = vmatpush.msra.mxu0 0.0
        %1443 = vmatpush.msra.mxu0 %v1422
        %1444 = vmatpush.msra.mxu0 %v1421
        %1445 = vmatpush.msra.mxu0 %v1420
        %1446 = vmatpush.msra.mxu0 %v1419
        %1447 = vmatmul.f32.gmra.mxu0 %v1429
        %v1448 = vpop.f32.mrf.mxu0
        %v1449 = vadd.f32 %v1426, %v1448
        %1450 = vdwg.mxu0
        %v1451 = vadd.f32 %v1110, %v1449
        %s1452 = scalar_lea.vmem %s10, 1
        %v1453 = vld [vmem:[%s1452] sm:$0x1]
        %s1454 = scalar_lea.vmem [#allocation8], 1
        %v1455 = vld [vmem:[%s1454] sm:$0x1]
        %v1456 = vsel %vm635, %v1451, 0.0
        %1457 = vadd.xlane.f32.xlu0 %v1456
        %v1458 = vpop.xlane.xlu0 %1457
        %v1459 = vmul.f32 %v1458, %v982
        %v1460 = vsub.f32 %v1451, %v1459
        %v1461 = vmul.f32 %v1460, %v1460
        %v1462 = vsel %vm635, %v1461, 0.0
        %1463 = vadd.xlane.f32.xlu0 %v1462
        %v1464 = vpop.xlane.xlu0 %1463
        %v1465 = vmul.f32 %v1464, %v982
        %v1466 = vadd.f32 %v1465, 1e-05
        %v1467 = vrsqrt.pop %v1466
        %v1468 = vmul.f32 %v1467, %v1466
        %v1469 = vmul.f32 %v1468, %v1467
        %v1470 = vmul.f32 0.5, %v1469
        %v1471 = vsub.f32 1.5, %v1470
        %v1472 = vmul.f32 %v1467, %v1471
        %vm1473 = vweird.f32 %v1466
        %vm1474 = vweird.f32 %v1467
        %vm1475 = vmor %vm1473, %vm1474
        %v1476 = vsel %vm1475, %v1467, %v1472
        %v1477 = vmul.f32 %v1460, %v1476
        %v1479 = vperm.slane %v1453, 0
        %v1481 = vmul.f32 %v1477, %v1479
        %v1483 = vperm.slane %v1455, 0
        %v1485 = vadd.f32 %v1481, %v1483
        %s1486 = scalar_lea.vmem %s6, 32
        %v1487 = vld [vmem:[%s1486] sm:$0xff]
        %v1488 = vld [vmem:[%s1486 + $0x8] sm:$0xff]
        %v1489 = vld [vmem:[%s1486 + $0x10] sm:$0xff]
        %v1490 = vld [vmem:[%s1486 + $0x18] sm:$0xff]
        %s1491 = scalar_lea.vmem %s7, 1
        %v1492 = vld [vmem:[%s1491] sm:$0x1]
        %v1494 = vperm.slane %v1492, 0
        %v1497 = vsel %vm635, %v1485, 0
        %1499 = vmatpush.msra.mxu0 0.0
        %1500 = vmatpush.msra.mxu0 0.0
        %1501 = vmatpush.msra.mxu0 0.0
        %1502 = vmatpush.msra.mxu0 0.0
        %1503 = vmatpush.msra.mxu0 0.0
        %1504 = vmatpush.msra.mxu0 0.0
        %1505 = vmatpush.msra.mxu0 0.0
        %1506 = vmatpush.msra.mxu0 0.0
        %1507 = vmatpush.msra.mxu0 0.0
        %1508 = vmatpush.msra.mxu0 0.0
        %1509 = vmatpush.msra.mxu0 0.0
        %1510 = vmatpush.msra.mxu0 0.0
        %1511 = vmatpush.msra.mxu0 %v1490
        %1512 = vmatpush.msra.mxu0 %v1489
        %1513 = vmatpush.msra.mxu0 %v1488
        %1514 = vmatpush.msra.mxu0 %v1487
        %1515 = vmatmul.f32.gmra.mxu0 %v1497
        %v1516 = vpop.f32.mrf.mxu0
        %v1517 = vadd.f32 %v1494, %v1516
        %1518 = vdwg.mxu0
        %v1519 = vmax.f32 %v1517, 0.0
        %s1520 = scalar_lea.vmem %s8, 64
        %v1521 = vld [vmem:[%s1520] sm:$0xff]
        %v1522 = vld [vmem:[%s1520 + $0x8] sm:$0xff]
        %v1523 = vld [vmem:[%s1520 + $0x10] sm:$0xff]
        %v1524 = vld [vmem:[%s1520 + $0x18] sm:$0xff]
        %v1525 = vld [vmem:[%s1520 + $0x20] sm:$0xff]
        %v1526 = vld [vmem:[%s1520 + $0x28] sm:$0xff]
        %v1527 = vld [vmem:[%s1520 + $0x30] sm:$0xff]
        %v1528 = vld [vmem:[%s1520 + $0x38] sm:$0xff]
        %s1529 = scalar_lea.vmem %s9, 1
        %v1530 = vld [vmem:[%s1529] sm:$0x1]
        %v1532 = vperm.slane %v1530, 0
        %v1535 = vsel %vm1054, %v1519, 0
        %1537 = vmatpush.msra.mxu0 0.0
        %1538 = vmatpush.msra.mxu0 0.0
        %1539 = vmatpush.msra.mxu0 0.0
        %1540 = vmatpush.msra.mxu0 0.0
        %1541 = vmatpush.msra.mxu0 0.0
        %1542 = vmatpush.msra.mxu0 0.0
        %1543 = vmatpush.msra.mxu0 0.0
        %1544 = vmatpush.msra.mxu0 0.0
        %1545 = vmatpush.msra.mxu0 %v1528
        %1546 = vmatpush.msra.mxu0 %v1527
        %1547 = vmatpush.msra.mxu0 %v1526
        %1548 = vmatpush.msra.mxu0 %v1525
        %1549 = vmatpush.msra.mxu0 %v1524
        %1550 = vmatpush.msra.mxu0 %v1523
        %1551 = vmatpush.msra.mxu0 %v1522
        %1552 = vmatpush.msra.mxu0 %v1521
        %1553 = vmatmul.f32.gmra.mxu0 %v1535
        %v1554 = vpop.f32.mrf.mxu0
        %v1555 = vadd.f32 %v1532, %v1554
        %1556 = vdwg.mxu0
        %v1557 = vadd.f32 %v1485, %v1555
        %s1558 = scalar_lea.vmem %s12, 1
        %v1559 = vld [vmem:[%s1558] sm:$0x1]
        %s1560 = scalar_lea.vmem [#allocation10], 1
        %v1561 = vld [vmem:[%s1560] sm:$0x1]
        %v1562 = vsel %vm635, %v1557, 0.0
        %1563 = vadd.xlane.f32.xlu0 %v1562
        %v1564 = vpop.xlane.xlu0 %1563
        %v1565 = vmul.f32 %v1564, %v982
        %v1566 = vsub.f32 %v1557, %v1565
        %v1567 = vmul.f32 %v1566, %v1566
        %v1568 = vsel %vm635, %v1567, 0.0
        %1569 = vadd.xlane.f32.xlu0 %v1568
        %v1570 = vpop.xlane.xlu0 %1569
        %v1571 = vmul.f32 %v1570, %v982
        %v1572 = vadd.f32 %v1571, 1e-05
        %v1573 = vrsqrt.pop %v1572
        %v1574 = vmul.f32 %v1573, %v1572
        %v1575 = vmul.f32 %v1574, %v1573
        %v1576 = vmul.f32 0.5, %v1575
        %v1577 = vsub.f32 1.5, %v1576
        %v1578 = vmul.f32 %v1573, %v1577
        %vm1579 = vweird.f32 %v1572
        %vm1580 = vweird.f32 %v1573
        %vm1581 = vmor %vm1579, %vm1580
        %v1582 = vsel %vm1581, %v1573, %v1578
        %v1583 = vmul.f32 %v1566, %v1582
        %v1585 = vperm.slane %v1559, 0
        %v1587 = vmul.f32 %v1583, %v1585
        %v1589 = vperm.slane %v1561, 0
        %v1591 = vadd.f32 %v1587, %v1589
        %v1592 = vld [vmem:[%s14] sm:$0x1]
        %v1593 = vld [vmem:[%s15] sm:$0x1]
        %v1594 = vsel %vm635, %v1591, 0.0
        %1595 = vadd.xlane.f32.xlu0 %v1594
        %v1596 = vpop.xlane.xlu0 %1595
        %v1597 = vmul.f32 %v1596, %v982
        %v1598 = vsub.f32 %v1591, %v1597
        %v1599 = vmul.f32 %v1598, %v1598
        %v1600 = vsel %vm635, %v1599, 0.0
        %1601 = vadd.xlane.f32.xlu0 %v1600
        %v1602 = vpop.xlane.xlu0 %1601
        %v1603 = vmul.f32 %v1602, %v982
        %v1604 = vadd.f32 %v1603, 1e-05
        %v1605 = vrsqrt.pop %v1604
        %v1606 = vmul.f32 %v1605, %v1604
        %v1607 = vmul.f32 %v1606, %v1605
        %v1608 = vmul.f32 0.5, %v1607
        %v1609 = vsub.f32 1.5, %v1608
        %v1610 = vmul.f32 %v1605, %v1609
        %vm1611 = vweird.f32 %v1604
        %vm1612 = vweird.f32 %v1605
        %vm1613 = vmor %vm1611, %vm1612
        %v1614 = vsel %vm1613, %v1605, %v1610
        %v1615 = vmul.f32 %v1598, %v1614
        %v1617 = vperm.slane %v1592, 0
        %v1619 = vmul.f32 %v1615, %v1617
        %v1621 = vperm.slane %v1593, 0
        %v1623 = vadd.f32 %v1619, %v1621
        %1624 = vst.msk [vmem:[%s622] sm:$0xff] %vm635, %v1623
        %s1625 = sand.u32 %s391, 1
        %s1626 = scalar_lea.sflag [#allocation4], %s1625
        %s1627 = sand.u32 %s391, 1
        %s1628 = smul.addr %s1627, 8
        %s1629 = scalar_lea.vmem [#allocation11], %s1628
        // Predicated region
        $region105: #{tpu_custom_call.1} parent=83 // pred_check
          %p1630 = pneg %p401
        $region106: #{tpu_custom_call.1} parent=83 // pred_check_branch
          %1632 = sbr.rel (%p1630) target = $region108
        $region107: #{tpu_custom_call.1} parent=83 // pred_region
          %1634 = vsyncadd %s1626, 0
          %s1635 = smul.addr %s37, 8
          %s1636 = scalar_lea.hbm %s16, %s1635
          %s1638 = sshll.u32 %s1629, 4
          %s1639 = int_to_ptr.vmem [resolvable:$true] %s1638
          %s1640 = sshll.u32 %s1636, 4
          %s1641 = int_to_ptr.hbm [resolvable:$true] %s1640
          %1643 = dma.vmem_to_hbm [thread:$0]  %s1639, 128, %s1641, %s1626
        $region108: #{tpu_custom_call.1} parent=83 // pred_fallthru
          _
      $region84: #{tpu_custom_call.1} parent=5 // pred_fallthru
        _
      %p1644 = scmp.le.s32.totalorder 2, %s32
      // Predicated region
      $region109: #{tpu_custom_call.1} parent=5 // pred_check
        %p1645 = pneg %p1644
      $region110: #{tpu_custom_call.1} parent=5 // pred_check_branch
        %1647 = sbr.rel (%p1645) target = $region112
      $region111: #{tpu_custom_call.1} parent=5 // pred_region
        %s1648 = ssub.s32 %s32, 2
        // Predicated region
        $region113: #{tpu_custom_call.1} parent=111 // pred_check
          %p1649 = pneg %p407
        $region114: #{tpu_custom_call.1} parent=111 // pred_check_branch
          %1651 = sbr.rel (%p1649) target = $region116
        $region115: #{tpu_custom_call.1} parent=111 // pred_region
          %s1652 = sand.u32 %s392, 1
          %s1653 = scalar_lea.sflag [#allocation4], %s1652
          %s1654 = sand.u32 %s392, 1
          %s1655 = smul.addr %s1654, 8
          %s1656 = scalar_lea.vmem [#allocation11], %s1655
          %1658 = dma.done %s1653, 128
        $region116: #{tpu_custom_call.1} parent=111 // pred_fallthru
          _
      $region112: #{tpu_custom_call.1} parent=5 // pred_fallthru
        _
    $region6: #{tpu_custom_call.1} parent=1 // loop_footer
      %s36 = sadd.s32 1, %s32
    $region7: #{tpu_custom_call.1} parent=1 // loop_footer_branch
      %31 = sbr.rel target = $region3
    $region8: #{tpu_custom_call.1} parent=1 // loop_exit
      _
    %1659 = vsyncpa [#allocation3], 1
    %s1660 = scalar_lea.sflag [#allocation3], 1
    %1661 = vsyncpa %s1660, 1
    %1662 = vsyncpa [#allocation6], 1
    %s1663 = scalar_lea.sflag [#allocation6], 1
    %1664 = vsyncpa %s1663, 1
    %1665 = vsyncpa [#allocation9], 1
    %1666 = vsyncpa [#allocation4], 1
    %s1667 = scalar_lea.sflag [#allocation4], 1
    %1668 = vsyncpa %s1667, 1

</llo_original>
